<compile_context>
chip_gen: v6e
topology: v6e:2x2x1
jax: 0.10.0
libtpu: 0.0.40
codegen_flags: <defaults>
</compile_context>

<pallas_src>
import functools

import jax
import jax.numpy as jnp
from jax.experimental import pallas as pl
from jax.experimental.pallas import tpu as pltpu  # noqa: F401  (TPU backend)

# ---------------- small BERT config ----------------
VOCAB = 128
HIDDEN = 32
N_LAYERS = 2
N_HEADS = 2
HEAD_DIM = HIDDEN // N_HEADS
INTERMEDIATE = 64
MAX_POS = 16
TYPE_VOCAB = 2
LN_EPS = 1e-12
BATCH = 2
SEQ = 8


# ---------------- in-kernel helpers ----------------
def _gelu(x):
    # TODO(synk): HF BERT uses the exact erf-based GELU; tanh approximation is
    # used here for robust Mosaic lowering (numerically very close).
    return 0.5 * x * (1.0 + jnp.tanh(0.7978845608028654 * (x + 0.044715 * x * x * x)))


def _layernorm(x, g, b):
    mean = jnp.mean(x, axis=-1, keepdims=True)
    var = jnp.mean((x - mean) * (x - mean), axis=-1, keepdims=True)
    return (x - mean) * jax.lax.rsqrt(var + LN_EPS) * g + b


# ---------------- Pallas kernels ----------------
def _layernorm_kernel(x_ref, g_ref, b_ref, o_ref):
    # LayerNorm with no residual input (embeddings / MLM head).
    x = x_ref[...].astype(jnp.float32)
    o_ref[...] = _layernorm(x, g_ref[...], b_ref[...]).astype(o_ref.dtype)


def layernorm(x, gamma, beta):
    return pl.pallas_call(
        _layernorm_kernel,
        out_shape=jax.ShapeDtypeStruct(x.shape, jnp.float32),
    )(x, gamma, beta)


def _layer_kernel(h_ref, mask_ref, wqkv_ref, bqkv_ref, wo_ref, bo_ref,
                  ln1g_ref, ln1b_ref, w1_ref, b1_ref, w2_ref, b2_ref,
                  ln2g_ref, ln2b_ref, o_ref, *, scale):
    """One full BERT encoder layer, fully fused, single invocation (no grid)."""
    h = h_ref[...].astype(jnp.float32)            # (M, H)
    addm = mask_ref[...].astype(jnp.float32)      # (B, S) additive mask

    # ---- fused Q/K/V projection: one [H, 3H] matmul ----
    qkv = jnp.dot(h, wqkv_ref[...], preferred_element_type=jnp.float32) + bqkv_ref[...]
    q = qkv[:, 0:HIDDEN]
    k = qkv[:, HIDDEN:2 * HIDDEN]
    v = qkv[:, 2 * HIDDEN:3 * HIDDEN]

    # ---- attention: static loop over (batch, head); all data stays in VMEM ----
    # Contract on the last dims of q and k (== q @ k^T without materializing k.T).
    dn_nt = (((1,), (1,)), ((), ()))
    batch_rows = []
    for b in range(BATCH):
        r0 = b * SEQ
        m_b = addm[b:b + 1, :]                    # (1, S): broadcasts over queries
        head_cols = []
        for hd in range(N_HEADS):
            c0 = hd * HEAD_DIM
            qb = q[r0:r0 + SEQ, c0:c0 + HEAD_DIM]  # (S, Dh)
            kb = k[r0:r0 + SEQ, c0:c0 + HEAD_DIM]
            vb = v[r0:r0 + SEQ, c0:c0 + HEAD_DIM]
            s = jax.lax.dot_general(qb, kb, dn_nt,
                                    preferred_element_type=jnp.float32)
            s = s * scale + m_b
            s = s - jnp.max(s, axis=-1, keepdims=True)
            p = jnp.exp(s)
            p = p / jnp.sum(p, axis=-1, keepdims=True)
            head_cols.append(jnp.dot(p, vb, preferred_element_type=jnp.float32))
        batch_rows.append(jnp.concatenate(head_cols, axis=1))   # (S, H)
    ctx = jnp.concatenate(batch_rows, axis=0)                    # (M, H)

    # ---- output projection + residual + LayerNorm ----
    ao = jnp.dot(ctx, wo_ref[...], preferred_element_type=jnp.float32) + bo_ref[...]
    x = _layernorm(ao + h, ln1g_ref[...], ln1b_ref[...])

    # ---- FFN (GELU) + residual + LayerNorm ----
    ff = _gelu(jnp.dot(x, w1_ref[...], preferred_element_type=jnp.float32) + b1_ref[...])
    ff = jnp.dot(ff, w2_ref[...], preferred_element_type=jnp.float32) + b2_ref[...]
    o_ref[...] = _layernorm(ff + x, ln2g_ref[...], ln2b_ref[...]).astype(o_ref.dtype)


def encoder_layer(h, addmask, layer, scale):
    M, H = h.shape
    return pl.pallas_call(
        functools.partial(_layer_kernel, scale=scale),
        out_shape=jax.ShapeDtypeStruct((M, H), jnp.float32),
    )(h, addmask,
      layer["wqkv"], layer["bqkv"], layer["wo"], layer["bo"],
      layer["ln1_g"], layer["ln1_b"], layer["w1"], layer["b1"],
      layer["w2"], layer["b2"], layer["ln2_g"], layer["ln2_b"])


def _mlm_head_loss_kernel(h_ref, w_ref, b_ref, g_ref, beta_ref,
                          wte_ref, decb_ref, lab_ref, o_ref):
    """MLM transform head + tied decoder + masked cross-entropy, fused."""
    # transform: dense + GELU + LayerNorm
    t = _gelu(jnp.dot(h_ref[...], w_ref[...],
                      preferred_element_type=jnp.float32) + b_ref[...])
    t = _layernorm(t, g_ref[...], beta_ref[...])

    # decoder: logits = t @ wte^T + dec_b (wte untransposed; contract hidden dims)
    dn_nt = (((1,), (1,)), ((), ()))
    logits = jax.lax.dot_general(t, wte_ref[...], dn_nt,
                                 preferred_element_type=jnp.float32)
    logits = logits + decb_ref[...]                               # (M, V)

    # masked cross-entropy (ignore_index = -100, mean over valid tokens)
    lab = lab_ref[...]                                            # (M, 1) int32
    m = jnp.max(logits, axis=-1, keepdims=True)
    lse = m + jnp.log(jnp.sum(jnp.exp(logits - m), axis=-1, keepdims=True))
    vocab_iota = jax.lax.broadcasted_iota(jnp.int32, logits.shape, 1)
    tgt = jnp.sum(jnp.where(vocab_iota == lab, logits, 0.0),
                  axis=-1, keepdims=True)                         # (M, 1)
    valid = (lab != -100).astype(jnp.float32)                     # (M, 1)
    per_row = (lse - tgt) * valid
    total = jnp.sum(per_row, axis=0, keepdims=True)               # (1, 1)
    count = jnp.sum(valid, axis=0, keepdims=True)                 # (1, 1)
    # TODO(synk): PyTorch mean-reduction returns NaN when no label is valid
    # (0/0); this returns 0.0 in that degenerate case.
    o_ref[...] = total / jnp.maximum(count, 1.0)


def mlm_head_loss(h, params, labels_2d):
    return pl.pallas_call(
        _mlm_head_loss_kernel,
        out_shape=jax.ShapeDtypeStruct((1, 1), jnp.float32),
    )(h, params["mlm_w"], params["mlm_b"], params["mlm_ln_g"], params["mlm_ln_b"],
      params["wte"], params["dec_b"], labels_2d)


# ---------------- parameter init (deterministic, synthetic) ----------------
def init_params(key):
    ks = jax.random.split(key, 8 + N_LAYERS)

    def nrm(k, shape):
        return 0.02 * jax.random.normal(k, shape, jnp.float32)

    p = {
        "wte": nrm(ks[0], (VOCAB, HIDDEN)),
        "wpe": nrm(ks[1], (MAX_POS, HIDDEN)),
        "wtt": nrm(ks[2], (TYPE_VOCAB, HIDDEN)),
        "emb_ln_g": jnp.ones((1, HIDDEN)), "emb_ln_b": jnp.zeros((1, HIDDEN)),
        "mlm_w": nrm(ks[3], (HIDDEN, HIDDEN)), "mlm_b": jnp.zeros((1, HIDDEN)),
        "mlm_ln_g": jnp.ones((1, HIDDEN)), "mlm_ln_b": jnp.zeros((1, HIDDEN)),
        "dec_b": jnp.zeros((1, VOCAB)),
        "layers": [],
    }
    for l in range(N_LAYERS):
        lk = jax.random.split(ks[8 + l], 6)
        wq = nrm(lk[0], (HIDDEN, HIDDEN))
        wk = nrm(lk[1], (HIDDEN, HIDDEN))
        wv = nrm(lk[2], (HIDDEN, HIDDEN))
        p["layers"].append(dict(
            # fused QKV weights / biases (equivalent to separate wq|wk|wv)
            wqkv=jnp.concatenate([wq, wk, wv], axis=1),        # (H, 3H)
            bqkv=jnp.zeros((1, 3 * HIDDEN)),
            wo=nrm(lk[3], (HIDDEN, HIDDEN)), bo=jnp.zeros((1, HIDDEN)),
            ln1_g=jnp.ones((1, HIDDEN)), ln1_b=jnp.zeros((1, HIDDEN)),
            w1=nrm(lk[4], (HIDDEN, INTERMEDIATE)), b1=jnp.zeros((1, INTERMEDIATE)),
            w2=nrm(lk[5], (INTERMEDIATE, HIDDEN)), b2=jnp.zeros((1, HIDDEN)),
            ln2_g=jnp.ones((1, HIDDEN)), ln2_b=jnp.zeros((1, HIDDEN)),
        ))
    return p


# ---------------- forward: BertForMaskedLM loss ----------------
def bert_mlm_loss(params, input_ids, attention_mask, labels):
    B, S = input_ids.shape
    M = B * S

    # embeddings (gather is JAX glue), then LayerNorm (no residual)
    pos = jnp.arange(S)
    emb = (params["wte"][input_ids]
           + params["wpe"][pos][None, :, :]
           + params["wtt"][0][None, None, :])
    h = layernorm(emb.reshape(M, HIDDEN), params["emb_ln_g"], params["emb_ln_b"])

    # HF-style additive mask: 0 where attended, large negative where padded
    addm = (1.0 - attention_mask.astype(jnp.float32)) * (-1e9)    # (B, S)

    scale = 1.0 / (HEAD_DIM ** 0.5)
    for layer in params["layers"]:
        h = encoder_layer(h, addm, layer, scale)                  # one kernel / layer

    # MLM head + tied decoder + masked cross-entropy (one fused kernel)
    lab = labels.reshape(M, 1).astype(jnp.int32)
    loss = mlm_head_loss(h, params, lab)
    return loss[0, 0]


if __name__ == "__main__":
    key = jax.random.PRNGKey(0)
    kp, kid, klab, kmask = jax.random.split(key, 4)

    params = init_params(kp)
    input_ids = jax.random.randint(kid, (BATCH, SEQ), 0, VOCAB, dtype=jnp.int32)
    attention_mask = jnp.ones((BATCH, SEQ), dtype=jnp.int32)
    # ~30% of positions carry an MLM target; the rest use ignore_index -100
    mlm_positions = jax.random.uniform(kmask, (BATCH, SEQ)) < 0.3
    targets = jax.random.randint(klab, (BATCH, SEQ), 0, VOCAB, dtype=jnp.int32)
    labels = jnp.where(mlm_positions, targets, -100)

    loss = jax.jit(bert_mlm_loss)(params, input_ids, attention_mask, labels)
    jax.block_until_ready(loss)
    assert loss.shape == () and jnp.isfinite(loss)
    print("KERNEL_OK")
</pallas_src>

<mosaic_0001>
module attributes {stable_mosaic.version = 11 : i64} {
  func.func @_layernorm_kernel(%arg0: memref<16x32xf32, #tpu.memory_space<vmem>>, %arg1: memref<1x32xf32, #tpu.memory_space<vmem>>, %arg2: memref<1x32xf32, #tpu.memory_space<vmem>>, %arg3: memref<16x32xf32, #tpu.memory_space<vmem>>) attributes {dimension_semantics = [], scalar_prefetch = 0 : i64, scratch_operands = 0 : i64, tpu.core_type = #tpu.core_type<tc>} {
    %c0 = arith.constant 0 : index
    %c0_0 = arith.constant 0 : index
    %0 = vector.load %arg0[%c0, %c0_0] : memref<16x32xf32, #tpu.memory_space<vmem>>, vector<16x32xf32>
    %c0_1 = arith.constant 0 : index
    %c0_2 = arith.constant 0 : index
    %1 = vector.load %arg1[%c0_1, %c0_2] : memref<1x32xf32, #tpu.memory_space<vmem>>, vector<1x32xf32>
    %c0_3 = arith.constant 0 : index
    %c0_4 = arith.constant 0 : index
    %2 = vector.load %arg2[%c0_3, %c0_4] : memref<1x32xf32, #tpu.memory_space<vmem>>, vector<1x32xf32>
    %cst = arith.constant dense<0.000000e+00> : vector<16xf32>
    %3 = vector.multi_reduction <add>, %0, %cst [1] : vector<16x32xf32> to vector<16xf32>
    %4 = vector.shape_cast %3 : vector<16xf32> to vector<16x1xf32>
    %cst_5 = arith.constant 3.200000e+01 : f32
    %5 = vector.broadcast %cst_5 : f32 to vector<16x1xf32>
    %6 = arith.divf %4, %5 : vector<16x1xf32>
    %7 = vector.broadcast %6 : vector<16x1xf32> to vector<16x32xf32>
    %8 = arith.subf %0, %7 : vector<16x32xf32>
    %9 = vector.broadcast %6 : vector<16x1xf32> to vector<16x32xf32>
    %10 = arith.subf %0, %9 : vector<16x32xf32>
    %11 = arith.mulf %8, %10 : vector<16x32xf32>
    %cst_6 = arith.constant dense<0.000000e+00> : vector<16xf32>
    %12 = vector.multi_reduction <add>, %11, %cst_6 [1] : vector<16x32xf32> to vector<16xf32>
    %13 = vector.shape_cast %12 : vector<16xf32> to vector<16x1xf32>
    %cst_7 = arith.constant 3.200000e+01 : f32
    %14 = vector.broadcast %cst_7 : f32 to vector<16x1xf32>
    %15 = arith.divf %13, %14 : vector<16x1xf32>
    %16 = vector.broadcast %6 : vector<16x1xf32> to vector<16x32xf32>
    %17 = arith.subf %0, %16 : vector<16x32xf32>
    %cst_8 = arith.constant 9.99999996E-13 : f32
    %18 = vector.broadcast %cst_8 : f32 to vector<16x1xf32>
    %19 = arith.addf %15, %18 : vector<16x1xf32>
    %20 = math.rsqrt %19 : vector<16x1xf32>
    %21 = vector.broadcast %20 : vector<16x1xf32> to vector<16x32xf32>
    %22 = arith.mulf %17, %21 : vector<16x32xf32>
    %23 = vector.broadcast %1 : vector<1x32xf32> to vector<16x32xf32>
    %24 = arith.mulf %22, %23 : vector<16x32xf32>
    %25 = vector.broadcast %2 : vector<1x32xf32> to vector<16x32xf32>
    %26 = arith.addf %24, %25 : vector<16x32xf32>
    %c0_9 = arith.constant 0 : index
    %c0_10 = arith.constant 0 : index
    %27 = vector.load %arg3[%c0_9, %c0_10] : memref<16x32xf32, #tpu.memory_space<vmem>>, vector<16x32xf32>
    tpu.vector_store %arg3[%c0_9, %c0_10], %26 {strides = array<i32>} : memref<16x32xf32, #tpu.memory_space<vmem>>, vector<16x32xf32>,
    return
  }
}

module attributes {stable_mosaic.version = 11 : i64} {
  func.func @_mlm_head_loss_kernel(%arg0: memref<16x32xf32, #tpu.memory_space<vmem>>, %arg1: memref<32x32xf32, #tpu.memory_space<vmem>>, %arg2: memref<1x32xf32, #tpu.memory_space<vmem>>, %arg3: memref<1x32xf32, #tpu.memory_space<vmem>>, %arg4: memref<1x32xf32, #tpu.memory_space<vmem>>, %arg5: memref<128x32xf32, #tpu.memory_space<vmem>>, %arg6: memref<1x128xf32, #tpu.memory_space<vmem>>, %arg7: memref<16x1xi32, #tpu.memory_space<vmem>>, %arg8: memref<1x1xf32, #tpu.memory_space<vmem>>) attributes {dimension_semantics = [], scalar_prefetch = 0 : i64, scratch_operands = 0 : i64, tpu.core_type = #tpu.core_type<tc>} {
    %c0 = arith.constant 0 : index
    %c0_0 = arith.constant 0 : index
    %0 = vector.load %arg0[%c0, %c0_0] : memref<16x32xf32, #tpu.memory_space<vmem>>, vector<16x32xf32>
    %c0_1 = arith.constant 0 : index
    %c0_2 = arith.constant 0 : index
    %1 = vector.load %arg1[%c0_1, %c0_2] : memref<32x32xf32, #tpu.memory_space<vmem>>, vector<32x32xf32>
    %cst = arith.constant dense<0.000000e+00> : vector<16x32xf32>
    %2 = tpu.matmul %0, %1, %cst {dimension_numbers = #tpu.dot_dimension_numbers<[1], [0], [0], [1], [0, 0, 1, 1], [], []>} : vector<16x32xf32>, vector<32x32xf32>, vector<16x32xf32> -> vector<16x32xf32>
    %c0_3 = arith.constant 0 : index
    %c0_4 = arith.constant 0 : index
    %3 = vector.load %arg2[%c0_3, %c0_4] : memref<1x32xf32, #tpu.memory_space<vmem>>, vector<1x32xf32>
    %4 = vector.broadcast %3 : vector<1x32xf32> to vector<16x32xf32>
    %5 = arith.addf %2, %4 : vector<16x32xf32>
    %cst_5 = arith.constant 5.000000e-01 : f32
    %6 = vector.broadcast %cst_5 : f32 to vector<16x32xf32>
    %7 = arith.mulf %6, %5 : vector<16x32xf32>
    %cst_6 = arith.constant 4.471500e-02 : f32
    %8 = vector.broadcast %cst_6 : f32 to vector<16x32xf32>
    %9 = arith.mulf %8, %5 : vector<16x32xf32>
    %10 = arith.mulf %9, %5 : vector<16x32xf32>
    %11 = arith.mulf %10, %5 : vector<16x32xf32>
    %12 = arith.addf %5, %11 : vector<16x32xf32>
    %cst_7 = arith.constant 0.797884583 : f32
    %13 = vector.broadcast %cst_7 : f32 to vector<16x32xf32>
    %14 = arith.mulf %13, %12 : vector<16x32xf32>
    %15 = math.tanh %14 : vector<16x32xf32>
    %cst_8 = arith.constant 1.000000e+00 : f32
    %16 = vector.broadcast %cst_8 : f32 to vector<16x32xf32>
    %17 = arith.addf %16, %15 : vector<16x32xf32>
    %18 = arith.mulf %7, %17 : vector<16x32xf32>
    %c0_9 = arith.constant 0 : index
    %c0_10 = arith.constant 0 : index
    %19 = vector.load %arg3[%c0_9, %c0_10] : memref<1x32xf32, #tpu.memory_space<vmem>>, vector<1x32xf32>
    %c0_11 = arith.constant 0 : index
    %c0_12 = arith.constant 0 : index
    %20 = vector.load %arg4[%c0_11, %c0_12] : memref<1x32xf32, #tpu.memory_space<vmem>>, vector<1x32xf32>
    %cst_13 = arith.constant dense<0.000000e+00> : vector<16xf32>
    %21 = vector.multi_reduction <add>, %18, %cst_13 [1] : vector<16x32xf32> to vector<16xf32>
    %22 = vector.shape_cast %21 : vector<16xf32> to vector<16x1xf32>
    %cst_14 = arith.constant 3.200000e+01 : f32
    %23 = vector.broadcast %cst_14 : f32 to vector<16x1xf32>
    %24 = arith.divf %22, %23 : vector<16x1xf32>
    %25 = vector.broadcast %24 : vector<16x1xf32> to vector<16x32xf32>
    %26 = arith.subf %18, %25 : vector<16x32xf32>
    %27 = vector.broadcast %24 : vector<16x1xf32> to vector<16x32xf32>
    %28 = arith.subf %18, %27 : vector<16x32xf32>
    %29 = arith.mulf %26, %28 : vector<16x32xf32>
    %cst_15 = arith.constant dense<0.000000e+00> : vector<16xf32>
    %30 = vector.multi_reduction <add>, %29, %cst_15 [1] : vector<16x32xf32> to vector<16xf32>
    %31 = vector.shape_cast %30 : vector<16xf32> to vector<16x1xf32>
    %cst_16 = arith.constant 3.200000e+01 : f32
    %32 = vector.broadcast %cst_16 : f32 to vector<16x1xf32>
    %33 = arith.divf %31, %32 : vector<16x1xf32>
    %34 = vector.broadcast %24 : vector<16x1xf32> to vector<16x32xf32>
    %35 = arith.subf %18, %34 : vector<16x32xf32>
    %cst_17 = arith.constant 9.99999996E-13 : f32
    %36 = vector.broadcast %cst_17 : f32 to vector<16x1xf32>
    %37 = arith.addf %33, %36 : vector<16x1xf32>
    %38 = math.rsqrt %37 : vector<16x1xf32>
    %39 = vector.broadcast %38 : vector<16x1xf32> to vector<16x32xf32>
    %40 = arith.mulf %35, %39 : vector<16x32xf32>
    %41 = vector.broadcast %19 : vector<1x32xf32> to vector<16x32xf32>
    %42 = arith.mulf %40, %41 : vector<16x32xf32>
    %43 = vector.broadcast %20 : vector<1x32xf32> to vector<16x32xf32>
    %44 = arith.addf %42, %43 : vector<16x32xf32>
    %c0_18 = arith.constant 0 : index
    %c0_19 = arith.constant 0 : index
    %45 = vector.load %arg5[%c0_18, %c0_19] : memref<128x32xf32, #tpu.memory_space<vmem>>, vector<128x32xf32>
    %cst_20 = arith.constant dense<0.000000e+00> : vector<16x128xf32>
    %46 = tpu.matmul %44, %45, %cst_20 {dimension_numbers = #tpu.dot_dimension_numbers<[1], [1], [0], [0], [0, 0, 1, 0], [], []>} : vector<16x32xf32>, vector<128x32xf32>, vector<16x128xf32> -> vector<16x128xf32>
    %c0_21 = arith.constant 0 : index
    %c0_22 = arith.constant 0 : index
    %47 = vector.load %arg6[%c0_21, %c0_22] : memref<1x128xf32, #tpu.memory_space<vmem>>, vector<1x128xf32>
    %48 = vector.broadcast %47 : vector<1x128xf32> to vector<16x128xf32>
    %49 = arith.addf %46, %48 : vector<16x128xf32>
    %c0_23 = arith.constant 0 : index
    %c0_24 = arith.constant 0 : index
    %50 = vector.load %arg7[%c0_23, %c0_24] : memref<16x1xi32, #tpu.memory_space<vmem>>, vector<16x1xi32>
    %cst_25 = arith.constant dense<0xFF800000> : vector<16xf32>
    %51 = vector.multi_reduction <maximumf>, %49, %cst_25 [1] : vector<16x128xf32> to vector<16xf32>
    %52 = vector.shape_cast %51 : vector<16xf32> to vector<16x1xf32>
    %53 = vector.broadcast %52 : vector<16x1xf32> to vector<16x128xf32>
    %54 = arith.subf %49, %53 : vector<16x128xf32>
    %55 = math.exp %54 : vector<16x128xf32>
    %cst_26 = arith.constant dense<0.000000e+00> : vector<16xf32>
    %56 = vector.multi_reduction <add>, %55, %cst_26 [1] : vector<16x128xf32> to vector<16xf32>
    %57 = vector.shape_cast %56 : vector<16xf32> to vector<16x1xf32>
    %58 = math.log %57 : vector<16x1xf32>
    %59 = arith.addf %52, %58 : vector<16x1xf32>
    %60 = tpu.iota {dimensions = array<i32: 1>} : vector<16x128xi32>
    %61 = vector.broadcast %50 : vector<16x1xi32> to vector<16x128xi32>
    %62 = arith.cmpi eq, %60, %61 : vector<16x128xi32>
    %cst_27 = arith.constant 0.000000e+00 : f32
    %63 = vector.broadcast %cst_27 : f32 to vector<16x128xf32>
    %64 = arith.select %62, %49, %63 : vector<16x128xi1>, vector<16x128xf32>
    %cst_28 = arith.constant dense<0.000000e+00> : vector<16xf32>
    %65 = vector.multi_reduction <add>, %64, %cst_28 [1] : vector<16x128xf32> to vector<16xf32>
    %66 = vector.shape_cast %65 : vector<16xf32> to vector<16x1xf32>
    %c-100_i32 = arith.constant -100 : i32
    %67 = vector.broadcast %c-100_i32 : i32 to vector<16x1xi32>
    %68 = arith.cmpi ne, %50, %67 : vector<16x1xi32>
    %69 = arith.extui %68 : vector<16x1xi1> to vector<16x1xi32>
    %70 = arith.sitofp %69 : vector<16x1xi32> to vector<16x1xf32>
    %71 = arith.subf %59, %66 : vector<16x1xf32>
    %72 = arith.mulf %71, %70 : vector<16x1xf32>
    %cst_29 = arith.constant dense<0.000000e+00> : vector<1xf32>
    %73 = vector.multi_reduction <add>, %72, %cst_29 [0] : vector<16x1xf32> to vector<1xf32>
    %74 = vector.shape_cast %73 : vector<1xf32> to vector<1x1xf32>
    %cst_30 = arith.constant dense<0.000000e+00> : vector<1xf32>
    %75 = vector.multi_reduction <add>, %70, %cst_30 [0] : vector<16x1xf32> to vector<1xf32>
    %76 = vector.shape_cast %75 : vector<1xf32> to vector<1x1xf32>
    %cst_31 = arith.constant 1.000000e+00 : f32
    %77 = vector.broadcast %cst_31 : f32 to vector<1x1xf32>
    %78 = arith.maximumf %76, %77 : vector<1x1xf32>
    %79 = arith.divf %74, %78 : vector<1x1xf32>
    %c0_32 = arith.constant 0 : index
    %c0_33 = arith.constant 0 : index
    %80 = vector.load %arg8[%c0_32, %c0_33] : memref<1x1xf32, #tpu.memory_space<vmem>>, vector<1x1xf32>
    tpu.vector_store %arg8[%c0_32, %c0_33], %79 {strides = array<i32>} : memref<1x1xf32, #tpu.memory_space<vmem>>, vector<1x1xf32>,
    return
  }
}

module attributes {stable_mosaic.version = 11 : i64} {
  func.func @_layer_kernel(%arg0: memref<16x32xf32, #tpu.memory_space<vmem>>, %arg1: memref<2x8xf32, #tpu.memory_space<vmem>>, %arg2: memref<32x96xf32, #tpu.memory_space<vmem>>, %arg3: memref<1x96xf32, #tpu.memory_space<vmem>>, %arg4: memref<32x32xf32, #tpu.memory_space<vmem>>, %arg5: memref<1x32xf32, #tpu.memory_space<vmem>>, %arg6: memref<1x32xf32, #tpu.memory_space<vmem>>, %arg7: memref<1x32xf32, #tpu.memory_space<vmem>>, %arg8: memref<32x64xf32, #tpu.memory_space<vmem>>, %arg9: memref<1x64xf32, #tpu.memory_space<vmem>>, %arg10: memref<64x32xf32, #tpu.memory_space<vmem>>, %arg11: memref<1x32xf32, #tpu.memory_space<vmem>>, %arg12: memref<1x32xf32, #tpu.memory_space<vmem>>, %arg13: memref<1x32xf32, #tpu.memory_space<vmem>>, %arg14: memref<16x32xf32, #tpu.memory_space<vmem>>) attributes {dimension_semantics = [], scalar_prefetch = 0 : i64, scratch_operands = 0 : i64, tpu.core_type = #tpu.core_type<tc>} {
    %c0 = arith.constant 0 : index
    %c0_0 = arith.constant 0 : index
    %0 = vector.load %arg0[%c0, %c0_0] : memref<16x32xf32, #tpu.memory_space<vmem>>, vector<16x32xf32>
    %c0_1 = arith.constant 0 : index
    %c0_2 = arith.constant 0 : index
    %1 = vector.load %arg1[%c0_1, %c0_2] : memref<2x8xf32, #tpu.memory_space<vmem>>, vector<2x8xf32>
    %c0_3 = arith.constant 0 : index
    %c0_4 = arith.constant 0 : index
    %2 = vector.load %arg2[%c0_3, %c0_4] : memref<32x96xf32, #tpu.memory_space<vmem>>, vector<32x96xf32>
    %cst = arith.constant dense<0.000000e+00> : vector<16x96xf32>
    %3 = tpu.matmul %0, %2, %cst {dimension_numbers = #tpu.dot_dimension_numbers<[1], [0], [0], [1], [0, 0, 1, 1], [], []>} : vector<16x32xf32>, vector<32x96xf32>, vector<16x96xf32> -> vector<16x96xf32>
    %c0_5 = arith.constant 0 : index
    %c0_6 = arith.constant 0 : index
    %4 = vector.load %arg3[%c0_5, %c0_6] : memref<1x96xf32, #tpu.memory_space<vmem>>, vector<1x96xf32>
    %5 = vector.broadcast %4 : vector<1x96xf32> to vector<16x96xf32>
    %6 = arith.addf %3, %5 : vector<16x96xf32>
    %7 = vector.extract_strided_slice %6 {offsets = [0, 0], sizes = [16, 32], strides = [1, 1]} : vector<16x96xf32> to vector<16x32xf32>
    %8 = vector.extract_strided_slice %6 {offsets = [0, 32], sizes = [16, 32], strides = [1, 1]} : vector<16x96xf32> to vector<16x32xf32>
    %9 = vector.extract_strided_slice %6 {offsets = [0, 64], sizes = [16, 32], strides = [1, 1]} : vector<16x96xf32> to vector<16x32xf32>
    %10 = vector.extract_strided_slice %1 {offsets = [0, 0], sizes = [1, 8], strides = [1, 1]} : vector<2x8xf32> to vector<1x8xf32>
    %11 = vector.extract_strided_slice %7 {offsets = [0, 0], sizes = [8, 16], strides = [1, 1]} : vector<16x32xf32> to vector<8x16xf32>
    %12 = vector.extract_strided_slice %8 {offsets = [0, 0], sizes = [8, 16], strides = [1, 1]} : vector<16x32xf32> to vector<8x16xf32>
    %13 = vector.extract_strided_slice %9 {offsets = [0, 0], sizes = [8, 16], strides = [1, 1]} : vector<16x32xf32> to vector<8x16xf32>
    %cst_7 = arith.constant dense<0.000000e+00> : vector<8x8xf32>
    %14 = tpu.matmul %11, %12, %cst_7 {dimension_numbers = #tpu.dot_dimension_numbers<[1], [1], [0], [0], [0, 0, 1, 0], [], []>} : vector<8x16xf32>, vector<8x16xf32>, vector<8x8xf32> -> vector<8x8xf32>
    %cst_8 = arith.constant 2.500000e-01 : f32
    %15 = vector.broadcast %cst_8 : f32 to vector<8x8xf32>
    %16 = arith.mulf %14, %15 : vector<8x8xf32>
    %17 = vector.broadcast %10 : vector<1x8xf32> to vector<8x8xf32>
    %18 = arith.addf %16, %17 : vector<8x8xf32>
    %cst_9 = arith.constant dense<0xFF800000> : vector<8xf32>
    %19 = vector.multi_reduction <maximumf>, %18, %cst_9 [1] : vector<8x8xf32> to vector<8xf32>
    %20 = vector.shape_cast %19 : vector<8xf32> to vector<8x1xf32>
    %21 = vector.broadcast %20 : vector<8x1xf32> to vector<8x8xf32>
    %22 = arith.subf %18, %21 : vector<8x8xf32>
    %23 = math.exp %22 : vector<8x8xf32>
    %cst_10 = arith.constant dense<0.000000e+00> : vector<8xf32>
    %24 = vector.multi_reduction <add>, %23, %cst_10 [1] : vector<8x8xf32> to vector<8xf32>
    %25 = vector.shape_cast %24 : vector<8xf32> to vector<8x1xf32>
    %26 = vector.broadcast %25 : vector<8x1xf32> to vector<8x8xf32>
    %27 = arith.divf %23, %26 : vector<8x8xf32>
    %cst_11 = arith.constant dense<0.000000e+00> : vector<8x16xf32>
    %28 = tpu.matmul %27, %13, %cst_11 {dimension_numbers = #tpu.dot_dimension_numbers<[1], [0], [0], [1], [0, 0, 1, 1], [], []>} : vector<8x8xf32>, vector<8x16xf32>, vector<8x16xf32> -> vector<8x16xf32>
    %29 = vector.extract_strided_slice %7 {offsets = [0, 16], sizes = [8, 16], strides = [1, 1]} : vector<16x32xf32> to vector<8x16xf32>
    %30 = vector.extract_strided_slice %8 {offsets = [0, 16], sizes = [8, 16], strides = [1, 1]} : vector<16x32xf32> to vector<8x16xf32>
    %31 = vector.extract_strided_slice %9 {offsets = [0, 16], sizes = [8, 16], strides = [1, 1]} : vector<16x32xf32> to vector<8x16xf32>
    %cst_12 = arith.constant dense<0.000000e+00> : vector<8x8xf32>
    %32 = tpu.matmul %29, %30, %cst_12 {dimension_numbers = #tpu.dot_dimension_numbers<[1], [1], [0], [0], [0, 0, 1, 0], [], []>} : vector<8x16xf32>, vector<8x16xf32>, vector<8x8xf32> -> vector<8x8xf32>
    %cst_13 = arith.constant 2.500000e-01 : f32
    %33 = vector.broadcast %cst_13 : f32 to vector<8x8xf32>
    %34 = arith.mulf %32, %33 : vector<8x8xf32>
    %35 = vector.broadcast %10 : vector<1x8xf32> to vector<8x8xf32>
    %36 = arith.addf %34, %35 : vector<8x8xf32>
    %cst_14 = arith.constant dense<0xFF800000> : vector<8xf32>
    %37 = vector.multi_reduction <maximumf>, %36, %cst_14 [1] : vector<8x8xf32> to vector<8xf32>
    %38 = vector.shape_cast %37 : vector<8xf32> to vector<8x1xf32>
    %39 = vector.broadcast %38 : vector<8x1xf32> to vector<8x8xf32>
    %40 = arith.subf %36, %39 : vector<8x8xf32>
    %41 = math.exp %40 : vector<8x8xf32>
    %cst_15 = arith.constant dense<0.000000e+00> : vector<8xf32>
    %42 = vector.multi_reduction <add>, %41, %cst_15 [1] : vector<8x8xf32> to vector<8xf32>
    %43 = vector.shape_cast %42 : vector<8xf32> to vector<8x1xf32>
    %44 = vector.broadcast %43 : vector<8x1xf32> to vector<8x8xf32>
    %45 = arith.divf %41, %44 : vector<8x8xf32>
    %cst_16 = arith.constant dense<0.000000e+00> : vector<8x16xf32>
    %46 = tpu.matmul %45, %31, %cst_16 {dimension_numbers = #tpu.dot_dimension_numbers<[1], [0], [0], [1], [0, 0, 1, 1], [], []>} : vector<8x8xf32>, vector<8x16xf32>, vector<8x16xf32> -> vector<8x16xf32>
    %47 = tpu.concatenate %28, %46 in 1 : vector<8x16xf32>, vector<8x16xf32> -> vector<8x32xf32>
    %48 = vector.extract_strided_slice %1 {offsets = [1, 0], sizes = [1, 8], strides = [1, 1]} : vector<2x8xf32> to vector<1x8xf32>
    %49 = vector.extract_strided_slice %7 {offsets = [8, 0], sizes = [8, 16], strides = [1, 1]} : vector<16x32xf32> to vector<8x16xf32>
    %50 = vector.extract_strided_slice %8 {offsets = [8, 0], sizes = [8, 16], strides = [1, 1]} : vector<16x32xf32> to vector<8x16xf32>
    %51 = vector.extract_strided_slice %9 {offsets = [8, 0], sizes = [8, 16], strides = [1, 1]} : vector<16x32xf32> to vector<8x16xf32>
    %cst_17 = arith.constant dense<0.000000e+00> : vector<8x8xf32>
    %52 = tpu.matmul %49, %50, %cst_17 {dimension_numbers = #tpu.dot_dimension_numbers<[1], [1], [0], [0], [0, 0, 1, 0], [], []>} : vector<8x16xf32>, vector<8x16xf32>, vector<8x8xf32> -> vector<8x8xf32>
    %cst_18 = arith.constant 2.500000e-01 : f32
    %53 = vector.broadcast %cst_18 : f32 to vector<8x8xf32>
    %54 = arith.mulf %52, %53 : vector<8x8xf32>
    %55 = vector.broadcast %48 : vector<1x8xf32> to vector<8x8xf32>
    %56 = arith.addf %54, %55 : vector<8x8xf32>
    %cst_19 = arith.constant dense<0xFF800000> : vector<8xf32>
    %57 = vector.multi_reduction <maximumf>, %56, %cst_19 [1] : vector<8x8xf32> to vector<8xf32>
    %58 = vector.shape_cast %57 : vector<8xf32> to vector<8x1xf32>
    %59 = vector.broadcast %58 : vector<8x1xf32> to vector<8x8xf32>
    %60 = arith.subf %56, %59 : vector<8x8xf32>
    %61 = math.exp %60 : vector<8x8xf32>
    %cst_20 = arith.constant dense<0.000000e+00> : vector<8xf32>
    %62 = vector.multi_reduction <add>, %61, %cst_20 [1] : vector<8x8xf32> to vector<8xf32>
    %63 = vector.shape_cast %62 : vector<8xf32> to vector<8x1xf32>
    %64 = vector.broadcast %63 : vector<8x1xf32> to vector<8x8xf32>
    %65 = arith.divf %61, %64 : vector<8x8xf32>
    %cst_21 = arith.constant dense<0.000000e+00> : vector<8x16xf32>
    %66 = tpu.matmul %65, %51, %cst_21 {dimension_numbers = #tpu.dot_dimension_numbers<[1], [0], [0], [1], [0, 0, 1, 1], [], []>} : vector<8x8xf32>, vector<8x16xf32>, vector<8x16xf32> -> vector<8x16xf32>
    %67 = vector.extract_strided_slice %7 {offsets = [8, 16], sizes = [8, 16], strides = [1, 1]} : vector<16x32xf32> to vector<8x16xf32>
    %68 = vector.extract_strided_slice %8 {offsets = [8, 16], sizes = [8, 16], strides = [1, 1]} : vector<16x32xf32> to vector<8x16xf32>
    %69 = vector.extract_strided_slice %9 {offsets = [8, 16], sizes = [8, 16], strides = [1, 1]} : vector<16x32xf32> to vector<8x16xf32>
    %cst_22 = arith.constant dense<0.000000e+00> : vector<8x8xf32>
    %70 = tpu.matmul %67, %68, %cst_22 {dimension_numbers = #tpu.dot_dimension_numbers<[1], [1], [0], [0], [0, 0, 1, 0], [], []>} : vector<8x16xf32>, vector<8x16xf32>, vector<8x8xf32> -> vector<8x8xf32>
    %cst_23 = arith.constant 2.500000e-01 : f32
    %71 = vector.broadcast %cst_23 : f32 to vector<8x8xf32>
    %72 = arith.mulf %70, %71 : vector<8x8xf32>
    %73 = vector.broadcast %48 : vector<1x8xf32> to vector<8x8xf32>
    %74 = arith.addf %72, %73 : vector<8x8xf32>
    %cst_24 = arith.constant dense<0xFF800000> : vector<8xf32>
    %75 = vector.multi_reduction <maximumf>, %74, %cst_24 [1] : vector<8x8xf32> to vector<8xf32>
    %76 = vector.shape_cast %75 : vector<8xf32> to vector<8x1xf32>
    %77 = vector.broadcast %76 : vector<8x1xf32> to vector<8x8xf32>
    %78 = arith.subf %74, %77 : vector<8x8xf32>
    %79 = math.exp %78 : vector<8x8xf32>
    %cst_25 = arith.constant dense<0.000000e+00> : vector<8xf32>
    %80 = vector.multi_reduction <add>, %79, %cst_25 [1] : vector<8x8xf32> to vector<8xf32>
    %81 = vector.shape_cast %80 : vector<8xf32> to vector<8x1xf32>
    %82 = vector.broadcast %81 : vector<8x1xf32> to vector<8x8xf32>
    %83 = arith.divf %79, %82 : vector<8x8xf32>
    %cst_26 = arith.constant dense<0.000000e+00> : vector<8x16xf32>
    %84 = tpu.matmul %83, %69, %cst_26 {dimension_numbers = #tpu.dot_dimension_numbers<[1], [0], [0], [1], [0, 0, 1, 1], [], []>} : vector<8x8xf32>, vector<8x16xf32>, vector<8x16xf32> -> vector<8x16xf32>
    %85 = tpu.concatenate %66, %84 in 1 : vector<8x16xf32>, vector<8x16xf32> -> vector<8x32xf32>
    %86 = tpu.concatenate %47, %85 in 0 : vector<8x32xf32>, vector<8x32xf32> -> vector<16x32xf32>
    %c0_27 = arith.constant 0 : index
    %c0_28 = arith.constant 0 : index
    %87 = vector.load %arg4[%c0_27, %c0_28] : memref<32x32xf32, #tpu.memory_space<vmem>>, vector<32x32xf32>
    %cst_29 = arith.constant dense<0.000000e+00> : vector<16x32xf32>
    %88 = tpu.matmul %86, %87, %cst_29 {dimension_numbers = #tpu.dot_dimension_numbers<[1], [0], [0], [1], [0, 0, 1, 1], [], []>} : vector<16x32xf32>, vector<32x32xf32>, vector<16x32xf32> -> vector<16x32xf32>
    %c0_30 = arith.constant 0 : index
    %c0_31 = arith.constant 0 : index
    %89 = vector.load %arg5[%c0_30, %c0_31] : memref<1x32xf32, #tpu.memory_space<vmem>>, vector<1x32xf32>
    %90 = vector.broadcast %89 : vector<1x32xf32> to vector<16x32xf32>
    %91 = arith.addf %88, %90 : vector<16x32xf32>
    %92 = arith.addf %91, %0 : vector<16x32xf32>
    %c0_32 = arith.constant 0 : index
    %c0_33 = arith.constant 0 : index
    %93 = vector.load %arg6[%c0_32, %c0_33] : memref<1x32xf32, #tpu.memory_space<vmem>>, vector<1x32xf32>
    %c0_34 = arith.constant 0 : index
    %c0_35 = arith.constant 0 : index
    %94 = vector.load %arg7[%c0_34, %c0_35] : memref<1x32xf32, #tpu.memory_space<vmem>>, vector<1x32xf32>
    %cst_36 = arith.constant dense<0.000000e+00> : vector<16xf32>
    %95 = vector.multi_reduction <add>, %92, %cst_36 [1] : vector<16x32xf32> to vector<16xf32>
    %96 = vector.shape_cast %95 : vector<16xf32> to vector<16x1xf32>
    %cst_37 = arith.constant 3.200000e+01 : f32
    %97 = vector.broadcast %cst_37 : f32 to vector<16x1xf32>
    %98 = arith.divf %96, %97 : vector<16x1xf32>
    %99 = vector.broadcast %98 : vector<16x1xf32> to vector<16x32xf32>
    %100 = arith.subf %92, %99 : vector<16x32xf32>
    %101 = vector.broadcast %98 : vector<16x1xf32> to vector<16x32xf32>
    %102 = arith.subf %92, %101 : vector<16x32xf32>
    %103 = arith.mulf %100, %102 : vector<16x32xf32>
    %cst_38 = arith.constant dense<0.000000e+00> : vector<16xf32>
    %104 = vector.multi_reduction <add>, %103, %cst_38 [1] : vector<16x32xf32> to vector<16xf32>
    %105 = vector.shape_cast %104 : vector<16xf32> to vector<16x1xf32>
    %cst_39 = arith.constant 3.200000e+01 : f32
    %106 = vector.broadcast %cst_39 : f32 to vector<16x1xf32>
    %107 = arith.divf %105, %106 : vector<16x1xf32>
    %108 = vector.broadcast %98 : vector<16x1xf32> to vector<16x32xf32>
    %109 = arith.subf %92, %108 : vector<16x32xf32>
    %cst_40 = arith.constant 9.99999996E-13 : f32
    %110 = vector.broadcast %cst_40 : f32 to vector<16x1xf32>
    %111 = arith.addf %107, %110 : vector<16x1xf32>
    %112 = math.rsqrt %111 : vector<16x1xf32>
    %113 = vector.broadcast %112 : vector<16x1xf32> to vector<16x32xf32>
    %114 = arith.mulf %109, %113 : vector<16x32xf32>
    %115 = vector.broadcast %93 : vector<1x32xf32> to vector<16x32xf32>
    %116 = arith.mulf %114, %115 : vector<16x32xf32>
    %117 = vector.broadcast %94 : vector<1x32xf32> to vector<16x32xf32>
    %118 = arith.addf %116, %117 : vector<16x32xf32>
    %c0_41 = arith.constant 0 : index
    %c0_42 = arith.constant 0 : index
    %119 = vector.load %arg8[%c0_41, %c0_42] : memref<32x64xf32, #tpu.memory_space<vmem>>, vector<32x64xf32>
    %cst_43 = arith.constant dense<0.000000e+00> : vector<16x64xf32>
    %120 = tpu.matmul %118, %119, %cst_43 {dimension_numbers = #tpu.dot_dimension_numbers<[1], [0], [0], [1], [0, 0, 1, 1], [], []>} : vector<16x32xf32>, vector<32x64xf32>, vector<16x64xf32> -> vector<16x64xf32>
    %c0_44 = arith.constant 0 : index
    %c0_45 = arith.constant 0 : index
    %121 = vector.load %arg9[%c0_44, %c0_45] : memref<1x64xf32, #tpu.memory_space<vmem>>, vector<1x64xf32>
    %122 = vector.broadcast %121 : vector<1x64xf32> to vector<16x64xf32>
    %123 = arith.addf %120, %122 : vector<16x64xf32>
    %cst_46 = arith.constant 5.000000e-01 : f32
    %124 = vector.broadcast %cst_46 : f32 to vector<16x64xf32>
    %125 = arith.mulf %124, %123 : vector<16x64xf32>
    %cst_47 = arith.constant 4.471500e-02 : f32
    %126 = vector.broadcast %cst_47 : f32 to vector<16x64xf32>
    %127 = arith.mulf %126, %123 : vector<16x64xf32>
    %128 = arith.mulf %127, %123 : vector<16x64xf32>
    %129 = arith.mulf %128, %123 : vector<16x64xf32>
    %130 = arith.addf %123, %129 : vector<16x64xf32>
    %cst_48 = arith.constant 0.797884583 : f32
    %131 = vector.broadcast %cst_48 : f32 to vector<16x64xf32>
    %132 = arith.mulf %131, %130 : vector<16x64xf32>
    %133 = math.tanh %132 : vector<16x64xf32>
    %cst_49 = arith.constant 1.000000e+00 : f32
    %134 = vector.broadcast %cst_49 : f32 to vector<16x64xf32>
    %135 = arith.addf %134, %133 : vector<16x64xf32>
    %136 = arith.mulf %125, %135 : vector<16x64xf32>
    %c0_50 = arith.constant 0 : index
    %c0_51 = arith.constant 0 : index
    %137 = vector.load %arg10[%c0_50, %c0_51] : memref<64x32xf32, #tpu.memory_space<vmem>>, vector<64x32xf32>
    %cst_52 = arith.constant dense<0.000000e+00> : vector<16x32xf32>
    %138 = tpu.matmul %136, %137, %cst_52 {dimension_numbers = #tpu.dot_dimension_numbers<[1], [0], [0], [1], [0, 0, 1, 1], [], []>} : vector<16x64xf32>, vector<64x32xf32>, vector<16x32xf32> -> vector<16x32xf32>
    %c0_53 = arith.constant 0 : index
    %c0_54 = arith.constant 0 : index
    %139 = vector.load %arg11[%c0_53, %c0_54] : memref<1x32xf32, #tpu.memory_space<vmem>>, vector<1x32xf32>
    %140 = vector.broadcast %139 : vector<1x32xf32> to vector<16x32xf32>
    %141 = arith.addf %138, %140 : vector<16x32xf32>
    %142 = arith.addf %141, %118 : vector<16x32xf32>
    %c0_55 = arith.constant 0 : index
    %c0_56 = arith.constant 0 : index
    %143 = vector.load %arg12[%c0_55, %c0_56] : memref<1x32xf32, #tpu.memory_space<vmem>>, vector<1x32xf32>
    %c0_57 = arith.constant 0 : index
    %c0_58 = arith.constant 0 : index
    %144 = vector.load %arg13[%c0_57, %c0_58] : memref<1x32xf32, #tpu.memory_space<vmem>>, vector<1x32xf32>
    %cst_59 = arith.constant dense<0.000000e+00> : vector<16xf32>
    %145 = vector.multi_reduction <add>, %142, %cst_59 [1] : vector<16x32xf32> to vector<16xf32>
    %146 = vector.shape_cast %145 : vector<16xf32> to vector<16x1xf32>
    %cst_60 = arith.constant 3.200000e+01 : f32
    %147 = vector.broadcast %cst_60 : f32 to vector<16x1xf32>
    %148 = arith.divf %146, %147 : vector<16x1xf32>
    %149 = vector.broadcast %148 : vector<16x1xf32> to vector<16x32xf32>
    %150 = arith.subf %142, %149 : vector<16x32xf32>
    %151 = vector.broadcast %148 : vector<16x1xf32> to vector<16x32xf32>
    %152 = arith.subf %142, %151 : vector<16x32xf32>
    %153 = arith.mulf %150, %152 : vector<16x32xf32>
    %cst_61 = arith.constant dense<0.000000e+00> : vector<16xf32>
    %154 = vector.multi_reduction <add>, %153, %cst_61 [1] : vector<16x32xf32> to vector<16xf32>
    %155 = vector.shape_cast %154 : vector<16xf32> to vector<16x1xf32>
    %cst_62 = arith.constant 3.200000e+01 : f32
    %156 = vector.broadcast %cst_62 : f32 to vector<16x1xf32>
    %157 = arith.divf %155, %156 : vector<16x1xf32>
    %158 = vector.broadcast %148 : vector<16x1xf32> to vector<16x32xf32>
    %159 = arith.subf %142, %158 : vector<16x32xf32>
    %cst_63 = arith.constant 9.99999996E-13 : f32
    %160 = vector.broadcast %cst_63 : f32 to vector<16x1xf32>
    %161 = arith.addf %157, %160 : vector<16x1xf32>
    %162 = math.rsqrt %161 : vector<16x1xf32>
    %163 = vector.broadcast %162 : vector<16x1xf32> to vector<16x32xf32>
    %164 = arith.mulf %159, %163 : vector<16x32xf32>
    %165 = vector.broadcast %143 : vector<1x32xf32> to vector<16x32xf32>
    %166 = arith.mulf %164, %165 : vector<16x32xf32>
    %167 = vector.broadcast %144 : vector<1x32xf32> to vector<16x32xf32>
    %168 = arith.addf %166, %167 : vector<16x32xf32>
    %c0_64 = arith.constant 0 : index
    %c0_65 = arith.constant 0 : index
    %169 = vector.load %arg14[%c0_64, %c0_65] : memref<16x32xf32, #tpu.memory_space<vmem>>, vector<16x32xf32>
    tpu.vector_store %arg14[%c0_64, %c0_65], %168 {strides = array<i32>} : memref<16x32xf32, #tpu.memory_space<vmem>>, vector<16x32xf32>,
    return
  }
}

</mosaic_0001>

<llo_original>
// kernel: bert_mlm_loss.4
$region0: #{bert_mlm_loss.4}
  #allocation0 [shape = 'u32[]', space=smem, size = 0x4, offset = 0x4, fixed_abs, tag = 'smem constant byte address 0x4 - core index']
  #allocation1 [shape = 'u32[144,128]{1,0:T(1,128)}', space=vmem, size = 0x12000, scoped, tag = 'internal scratch']
  %s0 = inlined_call_operand.vmem [shape: f32[16,32], index: 0, kind: input, shape index: {}]
  %s1 = inlined_call_operand.vmem [shape: f32[1,32], index: 1, kind: input, shape index: {}]
  %s2 = inlined_call_operand.vmem [shape: f32[1,32], index: 2, kind: input, shape index: {}]
  %s3 = inlined_call_operand.vmem [shape: f32[16,32], index: 3, kind: output, shape index: {}]
  %s4 = sld [smem:[#allocation0]]
  $region22: #{bert_mlm_loss.4} parent=0
    _
  %s6 = ssub.s32 1, %s4
  %s7 = scalar_select 0, %s6, %s4
  // Predicated region
  $region2: #{bert_mlm_loss.4} parent=0 // pred_check
    _
  $region3: #{bert_mlm_loss.4} parent=0 // pred_check_branch
    %9 = sbr.rel (0) target = $region5
  $region4: #{bert_mlm_loss.4} parent=0 // pred_region
    _
  $region5: #{bert_mlm_loss.4} parent=0 // pred_fallthru
    _
  // Predicated region
  $region6: #{bert_mlm_loss.4} parent=0 // pred_check
    _
  $region7: #{bert_mlm_loss.4} parent=0 // pred_check_branch
    %11 = sbr.rel (0) target = $region9
  $region8: #{bert_mlm_loss.4} parent=0 // pred_region
    _
  $region9: #{bert_mlm_loss.4} parent=0 // pred_fallthru
    _
  // Predicated region
  $region10: #{bert_mlm_loss.4} parent=0 // pred_check
    _
  $region11: #{bert_mlm_loss.4} parent=0 // pred_check_branch
    %13 = sbr.rel (0) target = $region13
  $region12: #{bert_mlm_loss.4} parent=0 // pred_region
    _
  $region13: #{bert_mlm_loss.4} parent=0 // pred_fallthru
    _
  %v14 = vld [vmem:[%s0] sm:$0xff]
  %v15 = vld [vmem:[%s0 + $0x8] sm:$0xff]
  %v16 = vld [vmem:[%s1] sm:$0x1]
  %v17 = vld [vmem:[%s2] sm:$0x1]
  %vm18 = vcmask 261120
  %v19 = vsel %vm18, %v14, 0.0
  %20 = vadd.xlane.f32.xlu0 %v19
  %v21 = vpop.xlane.xlu0 %20
  %v22 = vsel %vm18, %v15, 0.0
  %23 = vadd.xlane.f32.xlu0 %v22
  %v24 = vpop.xlane.xlu0 %23
  %v25 = vrcp.pop 32.0
  %v26 = vmul.f32 %v21, %v25
  %v27 = vmul.f32 %v24, %v25
  %v28 = vsub.f32 %v14, %v26
  %v29 = vsub.f32 %v15, %v27
  %v30 = vmul.f32 %v28, %v28
  %v31 = vmul.f32 %v29, %v29
  %v32 = vsel %vm18, %v30, 0.0
  %33 = vadd.xlane.f32.xlu0 %v32
  %v34 = vpop.xlane.xlu0 %33
  %v35 = vsel %vm18, %v31, 0.0
  %36 = vadd.xlane.f32.xlu0 %v35
  %v37 = vpop.xlane.xlu0 %36
  %v38 = vmul.f32 %v34, %v25
  %v39 = vmul.f32 %v37, %v25
  %v40 = vadd.f32 %v38, 1e-12
  %v41 = vadd.f32 %v39, 1e-12
  %v42 = vrsqrt.pop %v40
  %v43 = vrsqrt.pop %v41
  %v44 = vmul.f32 %v28, %v42
  %v45 = vmul.f32 %v29, %v43
  %v47 = vlaneseq
  %v48 = vshrl.u32 %v47, 7
  %v49 = vsub.s32 0, %v48
  %v50 = vrot.slane %v16, %v49
  %v52 = vmul.f32 %v44, %v50
  %v53 = vmul.f32 %v45, %v50
  %v55 = vlaneseq
  %v56 = vshrl.u32 %v55, 7
  %v57 = vsub.s32 0, %v56
  %v58 = vrot.slane %v17, %v57
  %v60 = vadd.f32 %v52, %v58
  %v61 = vadd.f32 %v53, %v58
  %62 = vst.msk [vmem:[%s3] sm:$0xff] %vm18, %v60
  %63 = vst.msk [vmem:[%s3 + $0x8] sm:$0xff] %vm18, %v61
  // Predicated region
  $region14: #{bert_mlm_loss.4} parent=0 // pred_check
    _
  $region15: #{bert_mlm_loss.4} parent=0 // pred_check_branch
    %65 = sbr.rel (0) target = $region17
  $region16: #{bert_mlm_loss.4} parent=0 // pred_region
    _
  $region17: #{bert_mlm_loss.4} parent=0 // pred_fallthru
    _
  // Predicated region
  $region18: #{bert_mlm_loss.4} parent=0 // pred_check
    _
  $region19: #{bert_mlm_loss.4} parent=0 // pred_check_branch
    %67 = sbr.rel (0) target = $region21
  $region20: #{bert_mlm_loss.4} parent=0 // pred_region
    _
  $region21: #{bert_mlm_loss.4} parent=0 // pred_fallthru
    _

// kernel: bert_mlm_loss.7
$region0: #{bert_mlm_loss.7}
  #allocation0 [shape = 'u32[]', space=smem, size = 0x4, offset = 0x4, fixed_abs, tag = 'smem constant byte address 0x4 - core index']
  #allocation1 [shape = 'u32[144,128]{1,0:T(1,128)}', space=vmem, size = 0x12000, scoped, tag = 'internal scratch']
  %s0 = inlined_call_operand.vmem [shape: f32[16,32], index: 0, kind: input, shape index: {}]
  %s1 = inlined_call_operand.vmem [shape: f32[32,32], index: 1, kind: input, shape index: {}]
  %s2 = inlined_call_operand.vmem [shape: f32[1,32], index: 2, kind: input, shape index: {}]
  %s3 = inlined_call_operand.vmem [shape: f32[1,32], index: 3, kind: input, shape index: {}]
  %s4 = inlined_call_operand.vmem [shape: f32[1,32], index: 4, kind: input, shape index: {}]
  %s5 = inlined_call_operand.vmem [shape: f32[128,32], index: 5, kind: input, shape index: {}]
  %s6 = inlined_call_operand.vmem [shape: f32[1,128], index: 6, kind: input, shape index: {}]
  %s7 = inlined_call_operand.vmem [shape: s32[16,1], index: 7, kind: input, shape index: {}]
  %s8 = inlined_call_operand.hbm [shape: f32[1,1], index: 8, kind: output, shape index: {}]
  %s9 = sld [smem:[#allocation0]]
  $region42: #{bert_mlm_loss.7} parent=0
    _
  %s11 = ssub.s32 1, %s9
  %s12 = scalar_select 0, %s11, %s9
  $region1: #{bert_mlm_loss.7} parent=0
    #allocation2 [shape = 'u8[512]{0}', space=vmem, size = 0x400, scoped, tag = 'output window, operand 0, single buffered']
    #allocation3 [shape = 's32[1]{0}', space=sflag, size = 0x4, scoped, tag = 'scoped memory for bert_mlm_loss.7']
    %13 = vsyncpa [#allocation3], 0
    // Predicated region
    $region2: #{bert_mlm_loss.7} parent=1 // pred_check
      _
    $region3: #{bert_mlm_loss.7} parent=1 // pred_check_branch
      %15 = sbr.rel (0) target = $region5
    $region4: #{bert_mlm_loss.7} parent=1 // pred_region
      _
    $region5: #{bert_mlm_loss.7} parent=1 // pred_fallthru
      _
    // Predicated region
    $region6: #{bert_mlm_loss.7} parent=1 // pred_check
      _
    $region7: #{bert_mlm_loss.7} parent=1 // pred_check_branch
      %17 = sbr.rel (0) target = $region9
    $region8: #{bert_mlm_loss.7} parent=1 // pred_region
      _
    $region9: #{bert_mlm_loss.7} parent=1 // pred_fallthru
      _
    // Predicated region
    $region10: #{bert_mlm_loss.7} parent=1 // pred_check
      _
    $region11: #{bert_mlm_loss.7} parent=1 // pred_check_branch
      %19 = sbr.rel (0) target = $region13
    $region12: #{bert_mlm_loss.7} parent=1 // pred_region
      _
    $region13: #{bert_mlm_loss.7} parent=1 // pred_fallthru
      _
    // Predicated region
    $region14: #{bert_mlm_loss.7} parent=1 // pred_check
      _
    $region15: #{bert_mlm_loss.7} parent=1 // pred_check_branch
      %21 = sbr.rel (0) target = $region17
    $region16: #{bert_mlm_loss.7} parent=1 // pred_region
      _
    $region17: #{bert_mlm_loss.7} parent=1 // pred_fallthru
      _
    // Predicated region
    $region18: #{bert_mlm_loss.7} parent=1 // pred_check
      _
    $region19: #{bert_mlm_loss.7} parent=1 // pred_check_branch
      %23 = sbr.rel (0) target = $region21
    $region20: #{bert_mlm_loss.7} parent=1 // pred_region
      _
    $region21: #{bert_mlm_loss.7} parent=1 // pred_fallthru
      _
    // Predicated region
    $region22: #{bert_mlm_loss.7} parent=1 // pred_check
      _
    $region23: #{bert_mlm_loss.7} parent=1 // pred_check_branch
      %25 = sbr.rel (0) target = $region25
    $region24: #{bert_mlm_loss.7} parent=1 // pred_region
      _
    $region25: #{bert_mlm_loss.7} parent=1 // pred_fallthru
      _
    // Predicated region
    $region26: #{bert_mlm_loss.7} parent=1 // pred_check
      _
    $region27: #{bert_mlm_loss.7} parent=1 // pred_check_branch
      %27 = sbr.rel (0) target = $region29
    $region28: #{bert_mlm_loss.7} parent=1 // pred_region
      _
    $region29: #{bert_mlm_loss.7} parent=1 // pred_fallthru
      _
    // Predicated region
    $region30: #{bert_mlm_loss.7} parent=1 // pred_check
      _
    $region31: #{bert_mlm_loss.7} parent=1 // pred_check_branch
      %29 = sbr.rel (0) target = $region33
    $region32: #{bert_mlm_loss.7} parent=1 // pred_region
      _
    $region33: #{bert_mlm_loss.7} parent=1 // pred_fallthru
      _
    %v30 = vld [vmem:[%s0] sm:$0xff]
    %v31 = vld [vmem:[%s0 + $0x8] sm:$0xff]
    %v32 = vld [vmem:[%s1] sm:$0xff]
    %v33 = vld [vmem:[%s1 + $0x8] sm:$0xff]
    %v34 = vld [vmem:[%s1 + $0x10] sm:$0xff]
    %v35 = vld [vmem:[%s1 + $0x18] sm:$0xff]
    %v36 = vld [vmem:[%s2] sm:$0x1]
    %v38 = vlaneseq
    %v39 = vshrl.u32 %v38, 7
    %v40 = vsub.s32 0, %v39
    %v41 = vrot.slane %v36, %v40
    %vm43 = vcmask 261120
    %v45 = vsel %vm43, %v30, 0
    %v48 = vsel %vm43, %v31, 0
    %50 = vmatprep.subr.mxu0 0.0
    %51 = vmatpush1.msra.mxu0 0.0
    %52 = vmatprep.subr.mxu0 0.0
    %53 = vmatpush1.msra.mxu0 0.0
    %54 = vmatprep.subr.mxu0 0.0
    %55 = vmatpush1.msra.mxu0 0.0
    %56 = vmatprep.subr.mxu0 0.0
    %57 = vmatpush1.msra.mxu0 0.0
    %58 = vmatprep.subr.mxu0 0.0
    %59 = vmatpush1.msra.mxu0 0.0
    %60 = vmatprep.subr.mxu0 0.0
    %61 = vmatpush1.msra.mxu0 0.0
    %62 = vmatprep.subr.mxu0 0.0
    %63 = vmatpush1.msra.mxu0 0.0
    %64 = vmatprep.subr.mxu0 0.0
    %65 = vmatpush1.msra.mxu0 0.0
    %66 = vmatprep.subr.mxu0 0.0
    %67 = vmatpush1.msra.mxu0 0.0
    %68 = vmatprep.subr.mxu0 0.0
    %69 = vmatpush1.msra.mxu0 0.0
    %70 = vmatprep.subr.mxu0 0.0
    %71 = vmatpush1.msra.mxu0 0.0
    %72 = vmatprep.subr.mxu0 0.0
    %73 = vmatpush1.msra.mxu0 0.0
    %74 = vmatprep.subr.mxu0 0.0
    %75 = vmatpush1.msra.mxu0 %v35
    %76 = vmatprep.subr.mxu0 0.0
    %77 = vmatpush1.msra.mxu0 %v34
    %78 = vmatprep.subr.mxu0 0.0
    %79 = vmatpush1.msra.mxu0 %v33
    %80 = vmatprep.subr.mxu0 0.0
    %81 = vmatpush1.msra.mxu0 %v32
    %82 = vmatprep.subr.mxu0 0.0
    %83 = vmatpush2.msra.mxu0 0.0
    %84 = vmatprep.subr.mxu0 0.0
    %85 = vmatpush2.msra.mxu0 0.0
    %86 = vmatprep.subr.mxu0 0.0
    %87 = vmatpush2.msra.mxu0 0.0
    %88 = vmatprep.subr.mxu0 0.0
    %89 = vmatpush2.msra.mxu0 0.0
    %90 = vmatprep.subr.mxu0 0.0
    %91 = vmatpush2.msra.mxu0 0.0
    %92 = vmatprep.subr.mxu0 0.0
    %93 = vmatpush2.msra.mxu0 0.0
    %94 = vmatprep.subr.mxu0 0.0
    %95 = vmatpush2.msra.mxu0 0.0
    %96 = vmatprep.subr.mxu0 0.0
    %97 = vmatpush2.msra.mxu0 0.0
    %98 = vmatprep.subr.mxu0 0.0
    %99 = vmatpush2.msra.mxu0 0.0
    %100 = vmatprep.subr.mxu0 0.0
    %101 = vmatpush2.msra.mxu0 0.0
    %102 = vmatprep.subr.mxu0 0.0
    %103 = vmatpush2.msra.mxu0 0.0
    %104 = vmatprep.subr.mxu0 0.0
    %105 = vmatpush2.msra.mxu0 0.0
    %106 = vmatprep.subr.mxu0 0.0
    %107 = vmatpush2.msra.mxu0 0.0
    %108 = vmatprep.subr.mxu0 0.0
    %109 = vmatpush2.msra.mxu0 0.0
    %110 = vmatprep.subr.mxu0 0.0
    %111 = vmatpush2.msra.mxu0 0.0
    %112 = vmatprep.subr.mxu0 0.0
    %113 = vmatpush2.msra.mxu0 0.0
    %114 = vmatprep.mubr.f32.mxu0 0.0
    %115 = vmatmul.mubr.f32.gmra.mxu0 %v45
    %v116 = vpop.f32.mrf.mxu0
    %v117 = vadd.f32 %v41, %v116
    %v118 = vpop.f32.mrf.mxu0
    %119 = vmatprep.mubr.f32.mxu0 0.0
    %120 = vmatmul.mubr.f32.gmra.mxu0 %v48
    %v121 = vpop.f32.mrf.mxu0
    %v122 = vadd.f32 %v41, %v121
    %v123 = vpop.f32.mrf.mxu0
    %124 = vdwg.mxu0
    %v125 = vmul.f32 %v117, 0.5
    %v126 = vmul.f32 %v122, 0.5
    %v127 = vmul.f32 %v117, 0.044715
    %v128 = vmul.f32 %v122, 0.044715
    %v129 = vmul.f32 %v127, %v117
    %v130 = vmul.f32 %v128, %v122
    %v131 = vmul.f32 %v129, %v117
    %v132 = vmul.f32 %v130, %v122
    %v133 = vadd.f32 %v117, %v131
    %v134 = vadd.f32 %v122, %v132
    %v135 = vmul.f32 %v133, 0.7978846
    %v136 = vmul.f32 %v134, 0.7978846
    %v137 = vtanh.pop %v135
    %v138 = vtanh.pop %v136
    %v139 = vadd.f32 %v137, 1.0
    %v140 = vadd.f32 %v138, 1.0
    %v141 = vmul.f32 %v125, %v139
    %v142 = vmul.f32 %v126, %v140
    %v143 = vld [vmem:[%s3] sm:$0x1]
    %v144 = vld [vmem:[%s4] sm:$0x1]
    %v145 = vsel %vm43, %v141, 0.0
    %146 = vadd.xlane.f32.xlu0 %v145
    %v147 = vpop.xlane.xlu0 %146
    %v148 = vsel %vm43, %v142, 0.0
    %149 = vadd.xlane.f32.xlu0 %v148
    %v150 = vpop.xlane.xlu0 %149
    %v151 = vrcp.pop 32.0
    %v152 = vmul.f32 %v147, %v151
    %v153 = vmul.f32 %v150, %v151
    %v154 = vsub.f32 %v141, %v152
    %v155 = vsub.f32 %v142, %v153
    %v156 = vmul.f32 %v154, %v154
    %v157 = vmul.f32 %v155, %v155
    %v158 = vsel %vm43, %v156, 0.0
    %159 = vadd.xlane.f32.xlu0 %v158
    %v160 = vpop.xlane.xlu0 %159
    %v161 = vsel %vm43, %v157, 0.0
    %162 = vadd.xlane.f32.xlu0 %v161
    %v163 = vpop.xlane.xlu0 %162
    %v164 = vmul.f32 %v160, %v151
    %v165 = vmul.f32 %v163, %v151
    %v166 = vadd.f32 %v164, 1e-12
    %v167 = vadd.f32 %v165, 1e-12
    %v168 = vrsqrt.pop %v166
    %v169 = vrsqrt.pop %v167
    %v170 = vmul.f32 %v154, %v168
    %v171 = vmul.f32 %v155, %v169
    %v173 = vlaneseq
    %v174 = vshrl.u32 %v173, 7
    %v175 = vsub.s32 0, %v174
    %v176 = vrot.slane %v143, %v175
    %v178 = vmul.f32 %v170, %v176
    %v179 = vmul.f32 %v171, %v176
    %v181 = vlaneseq
    %v182 = vshrl.u32 %v181, 7
    %v183 = vsub.s32 0, %v182
    %v184 = vrot.slane %v144, %v183
    %v186 = vadd.f32 %v178, %v184
    %v187 = vadd.f32 %v179, %v184
    %v188 = vld [vmem:[%s5] sm:$0xff]
    %v189 = vld [vmem:[%s5 + $0x8] sm:$0xff]
    %v190 = vld [vmem:[%s5 + $0x10] sm:$0xff]
    %v191 = vld [vmem:[%s5 + $0x18] sm:$0xff]
    %v192 = vld [vmem:[%s5 + $0x20] sm:$0xff]
    %v193 = vld [vmem:[%s5 + $0x28] sm:$0xff]
    %v194 = vld [vmem:[%s5 + $0x30] sm:$0xff]
    %v195 = vld [vmem:[%s5 + $0x38] sm:$0xff]
    %v196 = vld [vmem:[%s5 + $0x40] sm:$0xff]
    %v197 = vld [vmem:[%s5 + $0x48] sm:$0xff]
    %v198 = vld [vmem:[%s5 + $0x50] sm:$0xff]
    %v199 = vld [vmem:[%s5 + $0x58] sm:$0xff]
    %v200 = vld [vmem:[%s5 + $0x60] sm:$0xff]
    %v201 = vld [vmem:[%s5 + $0x68] sm:$0xff]
    %v202 = vld [vmem:[%s5 + $0x70] sm:$0xff]
    %v203 = vld [vmem:[%s5 + $0x78] sm:$0xff]
    %v204 = vld [vmem:[%s6] sm:$0x1]
    %v206 = vlaneseq
    %v207 = vshrl.u32 %v206, 7
    %v208 = vsub.s32 0, %v207
    %v209 = vrot.slane %v204, %v208
    %v212 = vsel %vm43, %v186, 0
    %v215 = vsel %vm43, %v187, 0
    %v218 = vsel %vm43, %v188, 0
    %v221 = vsel %vm43, %v189, 0
    %v224 = vsel %vm43, %v190, 0
    %v227 = vsel %vm43, %v191, 0
    %v230 = vsel %vm43, %v192, 0
    %v233 = vsel %vm43, %v193, 0
    %v236 = vsel %vm43, %v194, 0
    %v239 = vsel %vm43, %v195, 0
    %v242 = vsel %vm43, %v196, 0
    %v245 = vsel %vm43, %v197, 0
    %v248 = vsel %vm43, %v198, 0
    %v251 = vsel %vm43, %v199, 0
    %v254 = vsel %vm43, %v200, 0
    %v257 = vsel %vm43, %v201, 0
    %v260 = vsel %vm43, %v202, 0
    %v263 = vsel %vm43, %v203, 0
    %265 = vmatprep.subr.mxu0 0.0
    %266 = vmatpush1.xpose.msra.mxu0 %v263
    %267 = vmatprep.subr.mxu0 0.0
    %268 = vmatpush1.xpose.msra.mxu0 %v260
    %269 = vmatprep.subr.mxu0 0.0
    %270 = vmatpush1.xpose.msra.mxu0 %v257
    %271 = vmatprep.subr.mxu0 0.0
    %272 = vmatpush1.xpose.msra.mxu0 %v254
    %273 = vmatprep.subr.mxu0 0.0
    %274 = vmatpush1.xpose.msra.mxu0 %v251
    %275 = vmatprep.subr.mxu0 0.0
    %276 = vmatpush1.xpose.msra.mxu0 %v248
    %277 = vmatprep.subr.mxu0 0.0
    %278 = vmatpush1.xpose.msra.mxu0 %v245
    %279 = vmatprep.subr.mxu0 0.0
    %280 = vmatpush1.xpose.msra.mxu0 %v242
    %281 = vmatprep.subr.mxu0 0.0
    %282 = vmatpush1.xpose.msra.mxu0 %v239
    %283 = vmatprep.subr.mxu0 0.0
    %284 = vmatpush1.xpose.msra.mxu0 %v236
    %285 = vmatprep.subr.mxu0 0.0
    %286 = vmatpush1.xpose.msra.mxu0 %v233
    %287 = vmatprep.subr.mxu0 0.0
    %288 = vmatpush1.xpose.msra.mxu0 %v230
    %289 = vmatprep.subr.mxu0 0.0
    %290 = vmatpush1.xpose.msra.mxu0 %v227
    %291 = vmatprep.subr.mxu0 0.0
    %292 = vmatpush1.xpose.msra.mxu0 %v224
    %293 = vmatprep.subr.mxu0 0.0
    %294 = vmatpush1.xpose.msra.mxu0 %v221
    %295 = vmatprep.subr.mxu0 0.0
    %296 = vmatpush1.xpose.msra.mxu0 %v218
    %297 = vmatprep.subr.mxu0 0.0
    %298 = vmatpush2.xpose.msra.mxu0 0.0
    %299 = vmatprep.subr.mxu0 0.0
    %300 = vmatpush2.xpose.msra.mxu0 0.0
    %301 = vmatprep.subr.mxu0 0.0
    %302 = vmatpush2.xpose.msra.mxu0 0.0
    %303 = vmatprep.subr.mxu0 0.0
    %304 = vmatpush2.xpose.msra.mxu0 0.0
    %305 = vmatprep.subr.mxu0 0.0
    %306 = vmatpush2.xpose.msra.mxu0 0.0
    %307 = vmatprep.subr.mxu0 0.0
    %308 = vmatpush2.xpose.msra.mxu0 0.0
    %309 = vmatprep.subr.mxu0 0.0
    %310 = vmatpush2.xpose.msra.mxu0 0.0
    %311 = vmatprep.subr.mxu0 0.0
    %312 = vmatpush2.xpose.msra.mxu0 0.0
    %313 = vmatprep.subr.mxu0 0.0
    %314 = vmatpush2.xpose.msra.mxu0 0.0
    %315 = vmatprep.subr.mxu0 0.0
    %316 = vmatpush2.xpose.msra.mxu0 0.0
    %317 = vmatprep.subr.mxu0 0.0
    %318 = vmatpush2.xpose.msra.mxu0 0.0
    %319 = vmatprep.subr.mxu0 0.0
    %320 = vmatpush2.xpose.msra.mxu0 0.0
    %321 = vmatprep.subr.mxu0 0.0
    %322 = vmatpush2.xpose.msra.mxu0 0.0
    %323 = vmatprep.subr.mxu0 0.0
    %324 = vmatpush2.xpose.msra.mxu0 0.0
    %325 = vmatprep.subr.mxu0 0.0
    %326 = vmatpush2.xpose.msra.mxu0 0.0
    %327 = vmatprep.subr.mxu0 0.0
    %328 = vmatpush2.xpose.msra.mxu0 0.0
    %329 = vmatprep.mubr.f32.mxu0 0.0
    %330 = vmatmul.mubr.f32.gmra.mxu0 %v212
    %v331 = vpop.f32.mrf.mxu0
    %v332 = vadd.f32 %v209, %v331
    %v333 = vpop.f32.mrf.mxu0
    %334 = vmatprep.mubr.f32.mxu0 0.0
    %335 = vmatmul.mubr.f32.gmra.mxu0 %v215
    %v336 = vpop.f32.mrf.mxu0
    %v337 = vadd.f32 %v209, %v336
    %v338 = vpop.f32.mrf.mxu0
    %339 = vdwg.mxu0
    %v340 = vld [vmem:[%s7] sm:$0xff]
    %v341 = vld [vmem:[%s7 + $0x8] sm:$0xff]
    %342 = vmax.xlane.f32.xlu0 %v332
    %v343 = vpop.xlane.xlu0 %342
    %344 = vmax.xlane.f32.xlu0 %v337
    %v345 = vpop.xlane.xlu0 %344
    %v346 = vsub.f32 %v332, %v343
    %v347 = vsub.f32 %v337, %v345
    %v348 = vmul.f32 %v346, 1.442695
    %v349 = vpow.pop %v348
    %v350 = vmul.f32 %v347, 1.442695
    %v351 = vpow.pop %v350
    %352 = vadd.xlane.f32.xlu0 %v349
    %v353 = vpop.xlane.xlu0 %352
    %354 = vadd.xlane.f32.xlu0 %v351
    %v355 = vpop.xlane.xlu0 %354
    %v356 = vlog2.pop %v353
    %v357 = vmul.f32 %v356, 0.6931472
    %v358 = vlog2.pop %v355
    %v359 = vmul.f32 %v358, 0.6931472
    %v360 = vadd.f32 %v343, %v357
    %v361 = vadd.f32 %v345, %v359
    %v362 = vlaneseq
    %v363 = vand.u32 %v362, 127
    %364 = vset.pattern.permute.xlu0 0
    %365 = vperm.xlu0 %364, %v340
    %v366 = vpop.permute.xlu0 %365
    %367 = vset.pattern.permute.xlu0 0
    %368 = vperm.xlu0 %367, %v341
    %v369 = vpop.permute.xlu0 %368
    %vm370 = vcmp.eq.s32.totalorder %v363, %v366
    %vm371 = vcmp.eq.s32.totalorder %v363, %v369
    %v372 = vsel %vm370, %v332, 0.0
    %v373 = vsel %vm371, %v337, 0.0
    %374 = vadd.xlane.f32.xlu0 %v372
    %v375 = vpop.xlane.xlu0 %374
    %376 = vadd.xlane.f32.xlu0 %v373
    %v377 = vpop.xlane.xlu0 %376
    %vm378 = vcmp.ne.s32.totalorder %v340, 4294967196
    %vm379 = vcmp.ne.s32.totalorder %v341, 4294967196
    %v380 = vsel %vm378, 1, 0
    %v381 = vsel %vm379, 1, 0
    %v382 = vcvt.s32.f32 %v380
    %v383 = vcvt.s32.f32 %v381
    %v384 = vsub.f32 %v360, %v375
    %v385 = vsub.f32 %v361, %v377
    %v386 = vmul.f32 %v384, %v382
    %v387 = vmul.f32 %v385, %v383
    %vm388 = vcmask 7168
    %v389 = vsel %vm388, %v386, 0.0
    %v390 = vsel %vm388, %v387, 0.0
    %v391 = vadd.f32 %v389, %v390
    %v392 = vrot.slane %v391, 4
    %v393 = vadd.f32 %v391, %v392
    %v394 = vrot.slane %v393, 2
    %v395 = vadd.f32 %v393, %v394
    %v396 = vrot.slane %v395, 1
    %v397 = vadd.f32 %v395, %v396
    %v398 = vsel %vm388, %v382, 0.0
    %v399 = vsel %vm388, %v383, 0.0
    %v400 = vadd.f32 %v398, %v399
    %v401 = vrot.slane %v400, 4
    %v402 = vadd.f32 %v400, %v401
    %v403 = vrot.slane %v402, 2
    %v404 = vadd.f32 %v402, %v403
    %v405 = vrot.slane %v404, 1
    %v406 = vadd.f32 %v404, %v405
    %v407 = vmax.f32 %v406, 1.0
    %v408 = vrcp.pop %v407
    %v409 = vmul.f32 %v397, %v408
    %vm410 = vcmask 0
    %411 = vst.msk [vmem:[#allocation2] sm:$0x1] %vm410, %v409
    // Predicated region
    $region34: #{bert_mlm_loss.7} parent=1 // pred_check
      _
    $region35: #{bert_mlm_loss.7} parent=1 // pred_check_branch
      %413 = sbr.rel (0) target = $region37
    $region36: #{bert_mlm_loss.7} parent=1 // pred_region
      %s415 = ssub.s32 16, 16
      %416 = vsyncadd [#allocation3], %s415
      %s418 = sshll.u32 [#allocation2], 4
      %s419 = int_to_ptr.vmem [resolvable:$true] %s418
      %421 = dma.vmem_to_hbm [thread:$0]  %s419, 16, %s8, [#allocation3]
    $region37: #{bert_mlm_loss.7} parent=1 // pred_fallthru
      _
    // Predicated region
    $region38: #{bert_mlm_loss.7} parent=1 // pred_check
      _
    $region39: #{bert_mlm_loss.7} parent=1 // pred_check_branch
      %423 = sbr.rel (0) target = $region41
    $region40: #{bert_mlm_loss.7} parent=1 // pred_region
      %424 = dma.done [#allocation3], 16
    $region41: #{bert_mlm_loss.7} parent=1 // pred_fallthru
      _
    %425 = vsyncpa [#allocation3], 1

// kernel: bert_mlm_loss.5
$region0: #{bert_mlm_loss.5}
  #allocation0 [shape = 'u32[]', space=smem, size = 0x4, offset = 0x4, fixed_abs, tag = 'smem constant byte address 0x4 - core index']
  #allocation1 [shape = 'u32[144,128]{1,0:T(1,128)}', space=vmem, size = 0x12000, scoped, tag = 'internal scratch']
  %s0 = inlined_call_operand.vmem [shape: f32[16,32], index: 0, kind: input, shape index: {}]
  %s1 = inlined_call_operand.vmem [shape: f32[2,8], index: 1, kind: input, shape index: {}]
  %s2 = inlined_call_operand.vmem [shape: f32[32,96], index: 2, kind: input, shape index: {}]
  %s3 = inlined_call_operand.vmem [shape: f32[1,96], index: 3, kind: input, shape index: {}]
  %s4 = inlined_call_operand.vmem [shape: f32[32,32], index: 4, kind: input, shape index: {}]
  %s5 = inlined_call_operand.vmem [shape: f32[1,32], index: 5, kind: input, shape index: {}]
  %s6 = inlined_call_operand.vmem [shape: f32[1,32], index: 6, kind: input, shape index: {}]
  %s7 = inlined_call_operand.vmem [shape: f32[1,32], index: 7, kind: input, shape index: {}]
  %s8 = inlined_call_operand.vmem [shape: f32[32,64], index: 8, kind: input, shape index: {}]
  %s9 = inlined_call_operand.vmem [shape: f32[1,64], index: 9, kind: input, shape index: {}]
  %s10 = inlined_call_operand.vmem [shape: f32[64,32], index: 10, kind: input, shape index: {}]
  %s11 = inlined_call_operand.vmem [shape: f32[1,32], index: 11, kind: input, shape index: {}]
  %s12 = inlined_call_operand.vmem [shape: f32[1,32], index: 12, kind: input, shape index: {}]
  %s13 = inlined_call_operand.vmem [shape: f32[1,32], index: 13, kind: input, shape index: {}]
  %s14 = inlined_call_operand.vmem [shape: f32[16,32], index: 14, kind: output, shape index: {}]
  %s15 = sld [smem:[#allocation0]]
  $region66: #{bert_mlm_loss.5} parent=0
    _
  %s17 = ssub.s32 1, %s15
  %s18 = scalar_select 0, %s17, %s15
  // Predicated region
  $region2: #{bert_mlm_loss.5} parent=0 // pred_check
    _
  $region3: #{bert_mlm_loss.5} parent=0 // pred_check_branch
    %20 = sbr.rel (0) target = $region5
  $region4: #{bert_mlm_loss.5} parent=0 // pred_region
    _
  $region5: #{bert_mlm_loss.5} parent=0 // pred_fallthru
    _
  // Predicated region
  $region6: #{bert_mlm_loss.5} parent=0 // pred_check
    _
  $region7: #{bert_mlm_loss.5} parent=0 // pred_check_branch
    %22 = sbr.rel (0) target = $region9
  $region8: #{bert_mlm_loss.5} parent=0 // pred_region
    _
  $region9: #{bert_mlm_loss.5} parent=0 // pred_fallthru
    _
  // Predicated region
  $region10: #{bert_mlm_loss.5} parent=0 // pred_check
    _
  $region11: #{bert_mlm_loss.5} parent=0 // pred_check_branch
    %24 = sbr.rel (0) target = $region13
  $region12: #{bert_mlm_loss.5} parent=0 // pred_region
    _
  $region13: #{bert_mlm_loss.5} parent=0 // pred_fallthru
    _
  // Predicated region
  $region14: #{bert_mlm_loss.5} parent=0 // pred_check
    _
  $region15: #{bert_mlm_loss.5} parent=0 // pred_check_branch
    %26 = sbr.rel (0) target = $region17
  $region16: #{bert_mlm_loss.5} parent=0 // pred_region
    _
  $region17: #{bert_mlm_loss.5} parent=0 // pred_fallthru
    _
  // Predicated region
  $region18: #{bert_mlm_loss.5} parent=0 // pred_check
    _
  $region19: #{bert_mlm_loss.5} parent=0 // pred_check_branch
    %28 = sbr.rel (0) target = $region21
  $region20: #{bert_mlm_loss.5} parent=0 // pred_region
    _
  $region21: #{bert_mlm_loss.5} parent=0 // pred_fallthru
    _
  // Predicated region
  $region22: #{bert_mlm_loss.5} parent=0 // pred_check
    _
  $region23: #{bert_mlm_loss.5} parent=0 // pred_check_branch
    %30 = sbr.rel (0) target = $region25
  $region24: #{bert_mlm_loss.5} parent=0 // pred_region
    _
  $region25: #{bert_mlm_loss.5} parent=0 // pred_fallthru
    _
  // Predicated region
  $region26: #{bert_mlm_loss.5} parent=0 // pred_check
    _
  $region27: #{bert_mlm_loss.5} parent=0 // pred_check_branch
    %32 = sbr.rel (0) target = $region29
  $region28: #{bert_mlm_loss.5} parent=0 // pred_region
    _
  $region29: #{bert_mlm_loss.5} parent=0 // pred_fallthru
    _
  // Predicated region
  $region30: #{bert_mlm_loss.5} parent=0 // pred_check
    _
  $region31: #{bert_mlm_loss.5} parent=0 // pred_check_branch
    %34 = sbr.rel (0) target = $region33
  $region32: #{bert_mlm_loss.5} parent=0 // pred_region
    _
  $region33: #{bert_mlm_loss.5} parent=0 // pred_fallthru
    _
  // Predicated region
  $region34: #{bert_mlm_loss.5} parent=0 // pred_check
    _
  $region35: #{bert_mlm_loss.5} parent=0 // pred_check_branch
    %36 = sbr.rel (0) target = $region37
  $region36: #{bert_mlm_loss.5} parent=0 // pred_region
    _
  $region37: #{bert_mlm_loss.5} parent=0 // pred_fallthru
    _
  // Predicated region
  $region38: #{bert_mlm_loss.5} parent=0 // pred_check
    _
  $region39: #{bert_mlm_loss.5} parent=0 // pred_check_branch
    %38 = sbr.rel (0) target = $region41
  $region40: #{bert_mlm_loss.5} parent=0 // pred_region
    _
  $region41: #{bert_mlm_loss.5} parent=0 // pred_fallthru
    _
  // Predicated region
  $region42: #{bert_mlm_loss.5} parent=0 // pred_check
    _
  $region43: #{bert_mlm_loss.5} parent=0 // pred_check_branch
    %40 = sbr.rel (0) target = $region45
  $region44: #{bert_mlm_loss.5} parent=0 // pred_region
    _
  $region45: #{bert_mlm_loss.5} parent=0 // pred_fallthru
    _
  // Predicated region
  $region46: #{bert_mlm_loss.5} parent=0 // pred_check
    _
  $region47: #{bert_mlm_loss.5} parent=0 // pred_check_branch
    %42 = sbr.rel (0) target = $region49
  $region48: #{bert_mlm_loss.5} parent=0 // pred_region
    _
  $region49: #{bert_mlm_loss.5} parent=0 // pred_fallthru
    _
  // Predicated region
  $region50: #{bert_mlm_loss.5} parent=0 // pred_check
    _
  $region51: #{bert_mlm_loss.5} parent=0 // pred_check_branch
    %44 = sbr.rel (0) target = $region53
  $region52: #{bert_mlm_loss.5} parent=0 // pred_region
    _
  $region53: #{bert_mlm_loss.5} parent=0 // pred_fallthru
    _
  // Predicated region
  $region54: #{bert_mlm_loss.5} parent=0 // pred_check
    _
  $region55: #{bert_mlm_loss.5} parent=0 // pred_check_branch
    %46 = sbr.rel (0) target = $region57
  $region56: #{bert_mlm_loss.5} parent=0 // pred_region
    _
  $region57: #{bert_mlm_loss.5} parent=0 // pred_fallthru
    _
  %v47 = vld [vmem:[%s0] sm:$0xff]
  %v48 = vld [vmem:[%s0 + $0x8] sm:$0xff]
  %v49 = vld [vmem:[%s1] sm:$0x3]
  %v50 = vld [vmem:[%s2] sm:$0xff]
  %v51 = vld [vmem:[%s2 + $0x8] sm:$0xff]
  %v52 = vld [vmem:[%s2 + $0x10] sm:$0xff]
  %v53 = vld [vmem:[%s2 + $0x18] sm:$0xff]
  %v54 = vld [vmem:[%s3] sm:$0x1]
  %v56 = vlaneseq
  %v57 = vshrl.u32 %v56, 7
  %v58 = vsub.s32 0, %v57
  %v59 = vrot.slane %v54, %v58
  %vm61 = vcmask 261120
  %v63 = vsel %vm61, %v47, 0
  %v66 = vsel %vm61, %v48, 0
  %68 = vmatprep.subr.mxu0 0.0
  %69 = vmatpush1.msra.mxu0 0.0
  %70 = vmatprep.subr.mxu0 0.0
  %71 = vmatpush1.msra.mxu0 0.0
  %72 = vmatprep.subr.mxu0 0.0
  %73 = vmatpush1.msra.mxu0 0.0
  %74 = vmatprep.subr.mxu0 0.0
  %75 = vmatpush1.msra.mxu0 0.0
  %76 = vmatprep.subr.mxu0 0.0
  %77 = vmatpush1.msra.mxu0 0.0
  %78 = vmatprep.subr.mxu0 0.0
  %79 = vmatpush1.msra.mxu0 0.0
  %80 = vmatprep.subr.mxu0 0.0
  %81 = vmatpush1.msra.mxu0 0.0
  %82 = vmatprep.subr.mxu0 0.0
  %83 = vmatpush1.msra.mxu0 0.0
  %84 = vmatprep.subr.mxu0 0.0
  %85 = vmatpush1.msra.mxu0 0.0
  %86 = vmatprep.subr.mxu0 0.0
  %87 = vmatpush1.msra.mxu0 0.0
  %88 = vmatprep.subr.mxu0 0.0
  %89 = vmatpush1.msra.mxu0 0.0
  %90 = vmatprep.subr.mxu0 0.0
  %91 = vmatpush1.msra.mxu0 0.0
  %92 = vmatprep.subr.mxu0 0.0
  %93 = vmatpush1.msra.mxu0 %v53
  %94 = vmatprep.subr.mxu0 0.0
  %95 = vmatpush1.msra.mxu0 %v52
  %96 = vmatprep.subr.mxu0 0.0
  %97 = vmatpush1.msra.mxu0 %v51
  %98 = vmatprep.subr.mxu0 0.0
  %99 = vmatpush1.msra.mxu0 %v50
  %100 = vmatprep.subr.mxu0 0.0
  %101 = vmatpush2.msra.mxu0 0.0
  %102 = vmatprep.subr.mxu0 0.0
  %103 = vmatpush2.msra.mxu0 0.0
  %104 = vmatprep.subr.mxu0 0.0
  %105 = vmatpush2.msra.mxu0 0.0
  %106 = vmatprep.subr.mxu0 0.0
  %107 = vmatpush2.msra.mxu0 0.0
  %108 = vmatprep.subr.mxu0 0.0
  %109 = vmatpush2.msra.mxu0 0.0
  %110 = vmatprep.subr.mxu0 0.0
  %111 = vmatpush2.msra.mxu0 0.0
  %112 = vmatprep.subr.mxu0 0.0
  %113 = vmatpush2.msra.mxu0 0.0
  %114 = vmatprep.subr.mxu0 0.0
  %115 = vmatpush2.msra.mxu0 0.0
  %116 = vmatprep.subr.mxu0 0.0
  %117 = vmatpush2.msra.mxu0 0.0
  %118 = vmatprep.subr.mxu0 0.0
  %119 = vmatpush2.msra.mxu0 0.0
  %120 = vmatprep.subr.mxu0 0.0
  %121 = vmatpush2.msra.mxu0 0.0
  %122 = vmatprep.subr.mxu0 0.0
  %123 = vmatpush2.msra.mxu0 0.0
  %124 = vmatprep.subr.mxu0 0.0
  %125 = vmatpush2.msra.mxu0 0.0
  %126 = vmatprep.subr.mxu0 0.0
  %127 = vmatpush2.msra.mxu0 0.0
  %128 = vmatprep.subr.mxu0 0.0
  %129 = vmatpush2.msra.mxu0 0.0
  %130 = vmatprep.subr.mxu0 0.0
  %131 = vmatpush2.msra.mxu0 0.0
  %132 = vmatprep.mubr.f32.mxu0 0.0
  %133 = vmatmul.mubr.f32.gmra.mxu0 %v63
  %v134 = vpop.f32.mrf.mxu0
  %v135 = vadd.f32 %v59, %v134
  %v136 = vpop.f32.mrf.mxu0
  %137 = vmatprep.mubr.f32.mxu0 0.0
  %138 = vmatmul.mubr.f32.gmra.mxu0 %v66
  %v139 = vpop.f32.mrf.mxu0
  %v140 = vadd.f32 %v59, %v139
  %v141 = vpop.f32.mrf.mxu0
  %142 = vdwg.mxu0
  %144 = vrot.lane.b32.xlu0 %v135, 96
  %v145 = vpop.permute.xlu0 %144
  %vm146 = vcmask 130048
  %v147 = vsel %vm146, %v135, 0
  %v149 = vsel %vm146, %v145, 0
  %151 = vmatprep.subr.mxu0 0.0
  %152 = vmatpush1.xpose.msra.mxu0 0.0
  %153 = vmatprep.subr.mxu0 0.0
  %154 = vmatpush1.xpose.msra.mxu0 0.0
  %155 = vmatprep.subr.mxu0 0.0
  %156 = vmatpush1.xpose.msra.mxu0 0.0
  %157 = vmatprep.subr.mxu0 0.0
  %158 = vmatpush1.xpose.msra.mxu0 0.0
  %159 = vmatprep.subr.mxu0 0.0
  %160 = vmatpush1.xpose.msra.mxu0 0.0
  %161 = vmatprep.subr.mxu0 0.0
  %162 = vmatpush1.xpose.msra.mxu0 0.0
  %163 = vmatprep.subr.mxu0 0.0
  %164 = vmatpush1.xpose.msra.mxu0 0.0
  %165 = vmatprep.subr.mxu0 0.0
  %166 = vmatpush1.xpose.msra.mxu0 0.0
  %167 = vmatprep.subr.mxu0 0.0
  %168 = vmatpush1.xpose.msra.mxu0 0.0
  %169 = vmatprep.subr.mxu0 0.0
  %170 = vmatpush1.xpose.msra.mxu0 0.0
  %171 = vmatprep.subr.mxu0 0.0
  %172 = vmatpush1.xpose.msra.mxu0 0.0
  %173 = vmatprep.subr.mxu0 0.0
  %174 = vmatpush1.xpose.msra.mxu0 0.0
  %175 = vmatprep.subr.mxu0 0.0
  %176 = vmatpush1.xpose.msra.mxu0 0.0
  %177 = vmatprep.subr.mxu0 0.0
  %178 = vmatpush1.xpose.msra.mxu0 0.0
  %179 = vmatprep.subr.mxu0 0.0
  %180 = vmatpush1.xpose.msra.mxu0 0.0
  %181 = vmatprep.subr.mxu0 0.0
  %182 = vmatpush1.xpose.msra.mxu0 %v149
  %183 = vmatprep.subr.mxu0 0.0
  %184 = vmatpush2.xpose.msra.mxu0 0.0
  %185 = vmatprep.subr.mxu0 0.0
  %186 = vmatpush2.xpose.msra.mxu0 0.0
  %187 = vmatprep.subr.mxu0 0.0
  %188 = vmatpush2.xpose.msra.mxu0 0.0
  %189 = vmatprep.subr.mxu0 0.0
  %190 = vmatpush2.xpose.msra.mxu0 0.0
  %191 = vmatprep.subr.mxu0 0.0
  %192 = vmatpush2.xpose.msra.mxu0 0.0
  %193 = vmatprep.subr.mxu0 0.0
  %194 = vmatpush2.xpose.msra.mxu0 0.0
  %195 = vmatprep.subr.mxu0 0.0
  %196 = vmatpush2.xpose.msra.mxu0 0.0
  %197 = vmatprep.subr.mxu0 0.0
  %198 = vmatpush2.xpose.msra.mxu0 0.0
  %199 = vmatprep.subr.mxu0 0.0
  %200 = vmatpush2.xpose.msra.mxu0 0.0
  %201 = vmatprep.subr.mxu0 0.0
  %202 = vmatpush2.xpose.msra.mxu0 0.0
  %203 = vmatprep.subr.mxu0 0.0
  %204 = vmatpush2.xpose.msra.mxu0 0.0
  %205 = vmatprep.subr.mxu0 0.0
  %206 = vmatpush2.xpose.msra.mxu0 0.0
  %207 = vmatprep.subr.mxu0 0.0
  %208 = vmatpush2.xpose.msra.mxu0 0.0
  %209 = vmatprep.subr.mxu0 0.0
  %210 = vmatpush2.xpose.msra.mxu0 0.0
  %211 = vmatprep.subr.mxu0 0.0
  %212 = vmatpush2.xpose.msra.mxu0 0.0
  %213 = vmatprep.subr.mxu0 0.0
  %214 = vmatpush2.xpose.msra.mxu0 0.0
  %215 = vmatprep.mubr.f32.mxu0 0.0
  %216 = vmatmul.mubr.f32.gmra.mxu0 %v147
  %v217 = vpop.f32.mrf.mxu0
  %v218 = vadd.f32 0.0, %v217
  %v219 = vpop.f32.mrf.mxu0
  %220 = vdwg.mxu0
  %v221 = vmul.f32 %v218, 0.25
  %v222 = vlaneseq
  %v223 = vshrl.u32 %v222, 7
  %v224 = vsub.s32 0, %v223
  %v225 = vrot.slane %v49, %v224
  %v226 = vadd.f32 %v221, %v225
  %vm227 = vcmask 64512
  %v228 = vsel %vm227, %v226, -inf
  %229 = vmax.xlane.f32.xlu0 %v228
  %v230 = vpop.xlane.xlu0 %229
  %v231 = vsub.f32 %v226, %v230
  %v232 = vmul.f32 %v231, 1.442695
  %v233 = vpow.pop %v232
  %v234 = vsel %vm227, %v233, 0.0
  %235 = vadd.xlane.f32.xlu0 %v234
  %v236 = vpop.xlane.xlu0 %235
  %v237 = vrcp.pop %v236
  %v238 = vmul.f32 %v233, %v237
  %239 = vrot.lane.b32.xlu0 %v135, 64
  %v240 = vpop.permute.xlu0 %239
  %v243 = vsel %vm227, %v238, 0
  %245 = vmatprep.subr.mxu0 0.0
  %246 = vmatpush1.msra.mxu0 0.0
  %247 = vmatprep.subr.mxu0 0.0
  %248 = vmatpush1.msra.mxu0 0.0
  %249 = vmatprep.subr.mxu0 0.0
  %250 = vmatpush1.msra.mxu0 0.0
  %251 = vmatprep.subr.mxu0 0.0
  %252 = vmatpush1.msra.mxu0 0.0
  %253 = vmatprep.subr.mxu0 0.0
  %254 = vmatpush1.msra.mxu0 0.0
  %255 = vmatprep.subr.mxu0 0.0
  %256 = vmatpush1.msra.mxu0 0.0
  %257 = vmatprep.subr.mxu0 0.0
  %258 = vmatpush1.msra.mxu0 0.0
  %259 = vmatprep.subr.mxu0 0.0
  %260 = vmatpush1.msra.mxu0 0.0
  %261 = vmatprep.subr.mxu0 0.0
  %262 = vmatpush1.msra.mxu0 0.0
  %263 = vmatprep.subr.mxu0 0.0
  %264 = vmatpush1.msra.mxu0 0.0
  %265 = vmatprep.subr.mxu0 0.0
  %266 = vmatpush1.msra.mxu0 0.0
  %267 = vmatprep.subr.mxu0 0.0
  %268 = vmatpush1.msra.mxu0 0.0
  %269 = vmatprep.subr.mxu0 0.0
  %270 = vmatpush1.msra.mxu0 0.0
  %271 = vmatprep.subr.mxu0 0.0
  %272 = vmatpush1.msra.mxu0 0.0
  %273 = vmatprep.subr.mxu0 0.0
  %274 = vmatpush1.msra.mxu0 0.0
  %275 = vmatprep.subr.mxu0 0.0
  %276 = vmatpush1.msra.mxu0 %v240
  %277 = vmatprep.subr.mxu0 0.0
  %278 = vmatpush2.msra.mxu0 0.0
  %279 = vmatprep.subr.mxu0 0.0
  %280 = vmatpush2.msra.mxu0 0.0
  %281 = vmatprep.subr.mxu0 0.0
  %282 = vmatpush2.msra.mxu0 0.0
  %283 = vmatprep.subr.mxu0 0.0
  %284 = vmatpush2.msra.mxu0 0.0
  %285 = vmatprep.subr.mxu0 0.0
  %286 = vmatpush2.msra.mxu0 0.0
  %287 = vmatprep.subr.mxu0 0.0
  %288 = vmatpush2.msra.mxu0 0.0
  %289 = vmatprep.subr.mxu0 0.0
  %290 = vmatpush2.msra.mxu0 0.0
  %291 = vmatprep.subr.mxu0 0.0
  %292 = vmatpush2.msra.mxu0 0.0
  %293 = vmatprep.subr.mxu0 0.0
  %294 = vmatpush2.msra.mxu0 0.0
  %295 = vmatprep.subr.mxu0 0.0
  %296 = vmatpush2.msra.mxu0 0.0
  %297 = vmatprep.subr.mxu0 0.0
  %298 = vmatpush2.msra.mxu0 0.0
  %299 = vmatprep.subr.mxu0 0.0
  %300 = vmatpush2.msra.mxu0 0.0
  %301 = vmatprep.subr.mxu0 0.0
  %302 = vmatpush2.msra.mxu0 0.0
  %303 = vmatprep.subr.mxu0 0.0
  %304 = vmatpush2.msra.mxu0 0.0
  %305 = vmatprep.subr.mxu0 0.0
  %306 = vmatpush2.msra.mxu0 0.0
  %307 = vmatprep.subr.mxu0 0.0
  %308 = vmatpush2.msra.mxu0 0.0
  %309 = vmatprep.mubr.f32.mxu0 0.0
  %310 = vmatmul.mubr.f32.gmra.mxu0 %v243
  %v311 = vpop.f32.mrf.mxu0
  %v312 = vadd.f32 0.0, %v311
  %v313 = vpop.f32.mrf.mxu0
  %314 = vdwg.mxu0
  %315 = vrot.lane.b32.xlu0 %v135, 112
  %v316 = vpop.permute.xlu0 %315
  %317 = vrot.lane.b32.xlu0 %v135, 80
  %v318 = vpop.permute.xlu0 %317
  %v319 = vsel %vm146, %v316, 0
  %v321 = vsel %vm146, %v318, 0
  %323 = vmatprep.subr.mxu0 0.0
  %324 = vmatpush1.xpose.msra.mxu0 0.0
  %325 = vmatprep.subr.mxu0 0.0
  %326 = vmatpush1.xpose.msra.mxu0 0.0
  %327 = vmatprep.subr.mxu0 0.0
  %328 = vmatpush1.xpose.msra.mxu0 0.0
  %329 = vmatprep.subr.mxu0 0.0
  %330 = vmatpush1.xpose.msra.mxu0 0.0
  %331 = vmatprep.subr.mxu0 0.0
  %332 = vmatpush1.xpose.msra.mxu0 0.0
  %333 = vmatprep.subr.mxu0 0.0
  %334 = vmatpush1.xpose.msra.mxu0 0.0
  %335 = vmatprep.subr.mxu0 0.0
  %336 = vmatpush1.xpose.msra.mxu0 0.0
  %337 = vmatprep.subr.mxu0 0.0
  %338 = vmatpush1.xpose.msra.mxu0 0.0
  %339 = vmatprep.subr.mxu0 0.0
  %340 = vmatpush1.xpose.msra.mxu0 0.0
  %341 = vmatprep.subr.mxu0 0.0
  %342 = vmatpush1.xpose.msra.mxu0 0.0
  %343 = vmatprep.subr.mxu0 0.0
  %344 = vmatpush1.xpose.msra.mxu0 0.0
  %345 = vmatprep.subr.mxu0 0.0
  %346 = vmatpush1.xpose.msra.mxu0 0.0
  %347 = vmatprep.subr.mxu0 0.0
  %348 = vmatpush1.xpose.msra.mxu0 0.0
  %349 = vmatprep.subr.mxu0 0.0
  %350 = vmatpush1.xpose.msra.mxu0 0.0
  %351 = vmatprep.subr.mxu0 0.0
  %352 = vmatpush1.xpose.msra.mxu0 0.0
  %353 = vmatprep.subr.mxu0 0.0
  %354 = vmatpush1.xpose.msra.mxu0 %v321
  %355 = vmatprep.subr.mxu0 0.0
  %356 = vmatpush2.xpose.msra.mxu0 0.0
  %357 = vmatprep.subr.mxu0 0.0
  %358 = vmatpush2.xpose.msra.mxu0 0.0
  %359 = vmatprep.subr.mxu0 0.0
  %360 = vmatpush2.xpose.msra.mxu0 0.0
  %361 = vmatprep.subr.mxu0 0.0
  %362 = vmatpush2.xpose.msra.mxu0 0.0
  %363 = vmatprep.subr.mxu0 0.0
  %364 = vmatpush2.xpose.msra.mxu0 0.0
  %365 = vmatprep.subr.mxu0 0.0
  %366 = vmatpush2.xpose.msra.mxu0 0.0
  %367 = vmatprep.subr.mxu0 0.0
  %368 = vmatpush2.xpose.msra.mxu0 0.0
  %369 = vmatprep.subr.mxu0 0.0
  %370 = vmatpush2.xpose.msra.mxu0 0.0
  %371 = vmatprep.subr.mxu0 0.0
  %372 = vmatpush2.xpose.msra.mxu0 0.0
  %373 = vmatprep.subr.mxu0 0.0
  %374 = vmatpush2.xpose.msra.mxu0 0.0
  %375 = vmatprep.subr.mxu0 0.0
  %376 = vmatpush2.xpose.msra.mxu0 0.0
  %377 = vmatprep.subr.mxu0 0.0
  %378 = vmatpush2.xpose.msra.mxu0 0.0
  %379 = vmatprep.subr.mxu0 0.0
  %380 = vmatpush2.xpose.msra.mxu0 0.0
  %381 = vmatprep.subr.mxu0 0.0
  %382 = vmatpush2.xpose.msra.mxu0 0.0
  %383 = vmatprep.subr.mxu0 0.0
  %384 = vmatpush2.xpose.msra.mxu0 0.0
  %385 = vmatprep.subr.mxu0 0.0
  %386 = vmatpush2.xpose.msra.mxu0 0.0
  %387 = vmatprep.mubr.f32.mxu0 0.0
  %388 = vmatmul.mubr.f32.gmra.mxu0 %v319
  %v389 = vpop.f32.mrf.mxu0
  %v390 = vadd.f32 0.0, %v389
  %v391 = vpop.f32.mrf.mxu0
  %392 = vdwg.mxu0
  %v393 = vmul.f32 %v390, 0.25
  %v394 = vadd.f32 %v393, %v225
  %v395 = vsel %vm227, %v394, -inf
  %396 = vmax.xlane.f32.xlu0 %v395
  %v397 = vpop.xlane.xlu0 %396
  %v398 = vsub.f32 %v394, %v397
  %v399 = vmul.f32 %v398, 1.442695
  %v400 = vpow.pop %v399
  %v401 = vsel %vm227, %v400, 0.0
  %402 = vadd.xlane.f32.xlu0 %v401
  %v403 = vpop.xlane.xlu0 %402
  %v404 = vrcp.pop %v403
  %v405 = vmul.f32 %v400, %v404
  %406 = vrot.lane.b32.xlu0 %v135, 48
  %v407 = vpop.permute.xlu0 %406
  %v410 = vsel %vm227, %v405, 0
  %412 = vmatprep.subr.mxu0 0.0
  %413 = vmatpush1.msra.mxu0 0.0
  %414 = vmatprep.subr.mxu0 0.0
  %415 = vmatpush1.msra.mxu0 0.0
  %416 = vmatprep.subr.mxu0 0.0
  %417 = vmatpush1.msra.mxu0 0.0
  %418 = vmatprep.subr.mxu0 0.0
  %419 = vmatpush1.msra.mxu0 0.0
  %420 = vmatprep.subr.mxu0 0.0
  %421 = vmatpush1.msra.mxu0 0.0
  %422 = vmatprep.subr.mxu0 0.0
  %423 = vmatpush1.msra.mxu0 0.0
  %424 = vmatprep.subr.mxu0 0.0
  %425 = vmatpush1.msra.mxu0 0.0
  %426 = vmatprep.subr.mxu0 0.0
  %427 = vmatpush1.msra.mxu0 0.0
  %428 = vmatprep.subr.mxu0 0.0
  %429 = vmatpush1.msra.mxu0 0.0
  %430 = vmatprep.subr.mxu0 0.0
  %431 = vmatpush1.msra.mxu0 0.0
  %432 = vmatprep.subr.mxu0 0.0
  %433 = vmatpush1.msra.mxu0 0.0
  %434 = vmatprep.subr.mxu0 0.0
  %435 = vmatpush1.msra.mxu0 0.0
  %436 = vmatprep.subr.mxu0 0.0
  %437 = vmatpush1.msra.mxu0 0.0
  %438 = vmatprep.subr.mxu0 0.0
  %439 = vmatpush1.msra.mxu0 0.0
  %440 = vmatprep.subr.mxu0 0.0
  %441 = vmatpush1.msra.mxu0 0.0
  %442 = vmatprep.subr.mxu0 0.0
  %443 = vmatpush1.msra.mxu0 %v407
  %444 = vmatprep.subr.mxu0 0.0
  %445 = vmatpush2.msra.mxu0 0.0
  %446 = vmatprep.subr.mxu0 0.0
  %447 = vmatpush2.msra.mxu0 0.0
  %448 = vmatprep.subr.mxu0 0.0
  %449 = vmatpush2.msra.mxu0 0.0
  %450 = vmatprep.subr.mxu0 0.0
  %451 = vmatpush2.msra.mxu0 0.0
  %452 = vmatprep.subr.mxu0 0.0
  %453 = vmatpush2.msra.mxu0 0.0
  %454 = vmatprep.subr.mxu0 0.0
  %455 = vmatpush2.msra.mxu0 0.0
  %456 = vmatprep.subr.mxu0 0.0
  %457 = vmatpush2.msra.mxu0 0.0
  %458 = vmatprep.subr.mxu0 0.0
  %459 = vmatpush2.msra.mxu0 0.0
  %460 = vmatprep.subr.mxu0 0.0
  %461 = vmatpush2.msra.mxu0 0.0
  %462 = vmatprep.subr.mxu0 0.0
  %463 = vmatpush2.msra.mxu0 0.0
  %464 = vmatprep.subr.mxu0 0.0
  %465 = vmatpush2.msra.mxu0 0.0
  %466 = vmatprep.subr.mxu0 0.0
  %467 = vmatpush2.msra.mxu0 0.0
  %468 = vmatprep.subr.mxu0 0.0
  %469 = vmatpush2.msra.mxu0 0.0
  %470 = vmatprep.subr.mxu0 0.0
  %471 = vmatpush2.msra.mxu0 0.0
  %472 = vmatprep.subr.mxu0 0.0
  %473 = vmatpush2.msra.mxu0 0.0
  %474 = vmatprep.subr.mxu0 0.0
  %475 = vmatpush2.msra.mxu0 0.0
  %476 = vmatprep.mubr.f32.mxu0 0.0
  %477 = vmatmul.mubr.f32.gmra.mxu0 %v410
  %v478 = vpop.f32.mrf.mxu0
  %v479 = vadd.f32 0.0, %v478
  %v480 = vpop.f32.mrf.mxu0
  %481 = vdwg.mxu0
  %483 = vrot.lane.b32.xlu0 %v479, 16
  %v484 = vpop.permute.xlu0 %483
  %v486 = vsel %vm146, %v312, %v484
  %488 = vrot.lane.b32.xlu0 %v140, 96
  %v489 = vpop.permute.xlu0 %488
  %v490 = vsel %vm146, %v140, 0
  %v492 = vsel %vm146, %v489, 0
  %494 = vmatprep.subr.mxu0 0.0
  %495 = vmatpush1.xpose.msra.mxu0 0.0
  %496 = vmatprep.subr.mxu0 0.0
  %497 = vmatpush1.xpose.msra.mxu0 0.0
  %498 = vmatprep.subr.mxu0 0.0
  %499 = vmatpush1.xpose.msra.mxu0 0.0
  %500 = vmatprep.subr.mxu0 0.0
  %501 = vmatpush1.xpose.msra.mxu0 0.0
  %502 = vmatprep.subr.mxu0 0.0
  %503 = vmatpush1.xpose.msra.mxu0 0.0
  %504 = vmatprep.subr.mxu0 0.0
  %505 = vmatpush1.xpose.msra.mxu0 0.0
  %506 = vmatprep.subr.mxu0 0.0
  %507 = vmatpush1.xpose.msra.mxu0 0.0
  %508 = vmatprep.subr.mxu0 0.0
  %509 = vmatpush1.xpose.msra.mxu0 0.0
  %510 = vmatprep.subr.mxu0 0.0
  %511 = vmatpush1.xpose.msra.mxu0 0.0
  %512 = vmatprep.subr.mxu0 0.0
  %513 = vmatpush1.xpose.msra.mxu0 0.0
  %514 = vmatprep.subr.mxu0 0.0
  %515 = vmatpush1.xpose.msra.mxu0 0.0
  %516 = vmatprep.subr.mxu0 0.0
  %517 = vmatpush1.xpose.msra.mxu0 0.0
  %518 = vmatprep.subr.mxu0 0.0
  %519 = vmatpush1.xpose.msra.mxu0 0.0
  %520 = vmatprep.subr.mxu0 0.0
  %521 = vmatpush1.xpose.msra.mxu0 0.0
  %522 = vmatprep.subr.mxu0 0.0
  %523 = vmatpush1.xpose.msra.mxu0 0.0
  %524 = vmatprep.subr.mxu0 0.0
  %525 = vmatpush1.xpose.msra.mxu0 %v492
  %526 = vmatprep.subr.mxu0 0.0
  %527 = vmatpush2.xpose.msra.mxu0 0.0
  %528 = vmatprep.subr.mxu0 0.0
  %529 = vmatpush2.xpose.msra.mxu0 0.0
  %530 = vmatprep.subr.mxu0 0.0
  %531 = vmatpush2.xpose.msra.mxu0 0.0
  %532 = vmatprep.subr.mxu0 0.0
  %533 = vmatpush2.xpose.msra.mxu0 0.0
  %534 = vmatprep.subr.mxu0 0.0
  %535 = vmatpush2.xpose.msra.mxu0 0.0
  %536 = vmatprep.subr.mxu0 0.0
  %537 = vmatpush2.xpose.msra.mxu0 0.0
  %538 = vmatprep.subr.mxu0 0.0
  %539 = vmatpush2.xpose.msra.mxu0 0.0
  %540 = vmatprep.subr.mxu0 0.0
  %541 = vmatpush2.xpose.msra.mxu0 0.0
  %542 = vmatprep.subr.mxu0 0.0
  %543 = vmatpush2.xpose.msra.mxu0 0.0
  %544 = vmatprep.subr.mxu0 0.0
  %545 = vmatpush2.xpose.msra.mxu0 0.0
  %546 = vmatprep.subr.mxu0 0.0
  %547 = vmatpush2.xpose.msra.mxu0 0.0
  %548 = vmatprep.subr.mxu0 0.0
  %549 = vmatpush2.xpose.msra.mxu0 0.0
  %550 = vmatprep.subr.mxu0 0.0
  %551 = vmatpush2.xpose.msra.mxu0 0.0
  %552 = vmatprep.subr.mxu0 0.0
  %553 = vmatpush2.xpose.msra.mxu0 0.0
  %554 = vmatprep.subr.mxu0 0.0
  %555 = vmatpush2.xpose.msra.mxu0 0.0
  %556 = vmatprep.subr.mxu0 0.0
  %557 = vmatpush2.xpose.msra.mxu0 0.0
  %558 = vmatprep.mubr.f32.mxu0 0.0
  %559 = vmatmul.mubr.f32.gmra.mxu0 %v490
  %v560 = vpop.f32.mrf.mxu0
  %v561 = vadd.f32 0.0, %v560
  %v562 = vpop.f32.mrf.mxu0
  %563 = vdwg.mxu0
  %v564 = vmul.f32 %v561, 0.25
  %v565 = vlaneseq
  %v566 = vshrl.u32 %v565, 7
  %v567 = vsub.s32 1, %v566
  %v568 = vrot.slane %v49, %v567
  %v569 = vadd.f32 %v564, %v568
  %v570 = vsel %vm227, %v569, -inf
  %571 = vmax.xlane.f32.xlu0 %v570
  %v572 = vpop.xlane.xlu0 %571
  %v573 = vsub.f32 %v569, %v572
  %v574 = vmul.f32 %v573, 1.442695
  %v575 = vpow.pop %v574
  %v576 = vsel %vm227, %v575, 0.0
  %577 = vadd.xlane.f32.xlu0 %v576
  %v578 = vpop.xlane.xlu0 %577
  %v579 = vrcp.pop %v578
  %v580 = vmul.f32 %v575, %v579
  %581 = vrot.lane.b32.xlu0 %v140, 64
  %v582 = vpop.permute.xlu0 %581
  %v585 = vsel %vm227, %v580, 0
  %587 = vmatprep.subr.mxu0 0.0
  %588 = vmatpush1.msra.mxu0 0.0
  %589 = vmatprep.subr.mxu0 0.0
  %590 = vmatpush1.msra.mxu0 0.0
  %591 = vmatprep.subr.mxu0 0.0
  %592 = vmatpush1.msra.mxu0 0.0
  %593 = vmatprep.subr.mxu0 0.0
  %594 = vmatpush1.msra.mxu0 0.0
  %595 = vmatprep.subr.mxu0 0.0
  %596 = vmatpush1.msra.mxu0 0.0
  %597 = vmatprep.subr.mxu0 0.0
  %598 = vmatpush1.msra.mxu0 0.0
  %599 = vmatprep.subr.mxu0 0.0
  %600 = vmatpush1.msra.mxu0 0.0
  %601 = vmatprep.subr.mxu0 0.0
  %602 = vmatpush1.msra.mxu0 0.0
  %603 = vmatprep.subr.mxu0 0.0
  %604 = vmatpush1.msra.mxu0 0.0
  %605 = vmatprep.subr.mxu0 0.0
  %606 = vmatpush1.msra.mxu0 0.0
  %607 = vmatprep.subr.mxu0 0.0
  %608 = vmatpush1.msra.mxu0 0.0
  %609 = vmatprep.subr.mxu0 0.0
  %610 = vmatpush1.msra.mxu0 0.0
  %611 = vmatprep.subr.mxu0 0.0
  %612 = vmatpush1.msra.mxu0 0.0
  %613 = vmatprep.subr.mxu0 0.0
  %614 = vmatpush1.msra.mxu0 0.0
  %615 = vmatprep.subr.mxu0 0.0
  %616 = vmatpush1.msra.mxu0 0.0
  %617 = vmatprep.subr.mxu0 0.0
  %618 = vmatpush1.msra.mxu0 %v582
  %619 = vmatprep.subr.mxu0 0.0
  %620 = vmatpush2.msra.mxu0 0.0
  %621 = vmatprep.subr.mxu0 0.0
  %622 = vmatpush2.msra.mxu0 0.0
  %623 = vmatprep.subr.mxu0 0.0
  %624 = vmatpush2.msra.mxu0 0.0
  %625 = vmatprep.subr.mxu0 0.0
  %626 = vmatpush2.msra.mxu0 0.0
  %627 = vmatprep.subr.mxu0 0.0
  %628 = vmatpush2.msra.mxu0 0.0
  %629 = vmatprep.subr.mxu0 0.0
  %630 = vmatpush2.msra.mxu0 0.0
  %631 = vmatprep.subr.mxu0 0.0
  %632 = vmatpush2.msra.mxu0 0.0
  %633 = vmatprep.subr.mxu0 0.0
  %634 = vmatpush2.msra.mxu0 0.0
  %635 = vmatprep.subr.mxu0 0.0
  %636 = vmatpush2.msra.mxu0 0.0
  %637 = vmatprep.subr.mxu0 0.0
  %638 = vmatpush2.msra.mxu0 0.0
  %639 = vmatprep.subr.mxu0 0.0
  %640 = vmatpush2.msra.mxu0 0.0
  %641 = vmatprep.subr.mxu0 0.0
  %642 = vmatpush2.msra.mxu0 0.0
  %643 = vmatprep.subr.mxu0 0.0
  %644 = vmatpush2.msra.mxu0 0.0
  %645 = vmatprep.subr.mxu0 0.0
  %646 = vmatpush2.msra.mxu0 0.0
  %647 = vmatprep.subr.mxu0 0.0
  %648 = vmatpush2.msra.mxu0 0.0
  %649 = vmatprep.subr.mxu0 0.0
  %650 = vmatpush2.msra.mxu0 0.0
  %651 = vmatprep.mubr.f32.mxu0 0.0
  %652 = vmatmul.mubr.f32.gmra.mxu0 %v585
  %v653 = vpop.f32.mrf.mxu0
  %v654 = vadd.f32 0.0, %v653
  %v655 = vpop.f32.mrf.mxu0
  %656 = vdwg.mxu0
  %657 = vrot.lane.b32.xlu0 %v140, 112
  %v658 = vpop.permute.xlu0 %657
  %659 = vrot.lane.b32.xlu0 %v140, 80
  %v660 = vpop.permute.xlu0 %659
  %v661 = vsel %vm146, %v658, 0
  %v663 = vsel %vm146, %v660, 0
  %665 = vmatprep.subr.mxu0 0.0
  %666 = vmatpush1.xpose.msra.mxu0 0.0
  %667 = vmatprep.subr.mxu0 0.0
  %668 = vmatpush1.xpose.msra.mxu0 0.0
  %669 = vmatprep.subr.mxu0 0.0
  %670 = vmatpush1.xpose.msra.mxu0 0.0
  %671 = vmatprep.subr.mxu0 0.0
  %672 = vmatpush1.xpose.msra.mxu0 0.0
  %673 = vmatprep.subr.mxu0 0.0
  %674 = vmatpush1.xpose.msra.mxu0 0.0
  %675 = vmatprep.subr.mxu0 0.0
  %676 = vmatpush1.xpose.msra.mxu0 0.0
  %677 = vmatprep.subr.mxu0 0.0
  %678 = vmatpush1.xpose.msra.mxu0 0.0
  %679 = vmatprep.subr.mxu0 0.0
  %680 = vmatpush1.xpose.msra.mxu0 0.0
  %681 = vmatprep.subr.mxu0 0.0
  %682 = vmatpush1.xpose.msra.mxu0 0.0
  %683 = vmatprep.subr.mxu0 0.0
  %684 = vmatpush1.xpose.msra.mxu0 0.0
  %685 = vmatprep.subr.mxu0 0.0
  %686 = vmatpush1.xpose.msra.mxu0 0.0
  %687 = vmatprep.subr.mxu0 0.0
  %688 = vmatpush1.xpose.msra.mxu0 0.0
  %689 = vmatprep.subr.mxu0 0.0
  %690 = vmatpush1.xpose.msra.mxu0 0.0
  %691 = vmatprep.subr.mxu0 0.0
  %692 = vmatpush1.xpose.msra.mxu0 0.0
  %693 = vmatprep.subr.mxu0 0.0
  %694 = vmatpush1.xpose.msra.mxu0 0.0
  %695 = vmatprep.subr.mxu0 0.0
  %696 = vmatpush1.xpose.msra.mxu0 %v663
  %697 = vmatprep.subr.mxu0 0.0
  %698 = vmatpush2.xpose.msra.mxu0 0.0
  %699 = vmatprep.subr.mxu0 0.0
  %700 = vmatpush2.xpose.msra.mxu0 0.0
  %701 = vmatprep.subr.mxu0 0.0
  %702 = vmatpush2.xpose.msra.mxu0 0.0
  %703 = vmatprep.subr.mxu0 0.0
  %704 = vmatpush2.xpose.msra.mxu0 0.0
  %705 = vmatprep.subr.mxu0 0.0
  %706 = vmatpush2.xpose.msra.mxu0 0.0
  %707 = vmatprep.subr.mxu0 0.0
  %708 = vmatpush2.xpose.msra.mxu0 0.0
  %709 = vmatprep.subr.mxu0 0.0
  %710 = vmatpush2.xpose.msra.mxu0 0.0
  %711 = vmatprep.subr.mxu0 0.0
  %712 = vmatpush2.xpose.msra.mxu0 0.0
  %713 = vmatprep.subr.mxu0 0.0
  %714 = vmatpush2.xpose.msra.mxu0 0.0
  %715 = vmatprep.subr.mxu0 0.0
  %716 = vmatpush2.xpose.msra.mxu0 0.0
  %717 = vmatprep.subr.mxu0 0.0
  %718 = vmatpush2.xpose.msra.mxu0 0.0
  %719 = vmatprep.subr.mxu0 0.0
  %720 = vmatpush2.xpose.msra.mxu0 0.0
  %721 = vmatprep.subr.mxu0 0.0
  %722 = vmatpush2.xpose.msra.mxu0 0.0
  %723 = vmatprep.subr.mxu0 0.0
  %724 = vmatpush2.xpose.msra.mxu0 0.0
  %725 = vmatprep.subr.mxu0 0.0
  %726 = vmatpush2.xpose.msra.mxu0 0.0
  %727 = vmatprep.subr.mxu0 0.0
  %728 = vmatpush2.xpose.msra.mxu0 0.0
  %729 = vmatprep.mubr.f32.mxu0 0.0
  %730 = vmatmul.mubr.f32.gmra.mxu0 %v661
  %v731 = vpop.f32.mrf.mxu0
  %v732 = vadd.f32 0.0, %v731
  %v733 = vpop.f32.mrf.mxu0
  %734 = vdwg.mxu0
  %v735 = vmul.f32 %v732, 0.25
  %v736 = vadd.f32 %v735, %v568
  %v737 = vsel %vm227, %v736, -inf
  %738 = vmax.xlane.f32.xlu0 %v737
  %v739 = vpop.xlane.xlu0 %738
  %v740 = vsub.f32 %v736, %v739
  %v741 = vmul.f32 %v740, 1.442695
  %v742 = vpow.pop %v741
  %v743 = vsel %vm227, %v742, 0.0
  %744 = vadd.xlane.f32.xlu0 %v743
  %v745 = vpop.xlane.xlu0 %744
  %v746 = vrcp.pop %v745
  %v747 = vmul.f32 %v742, %v746
  %748 = vrot.lane.b32.xlu0 %v140, 48
  %v749 = vpop.permute.xlu0 %748
  %v752 = vsel %vm227, %v747, 0
  %754 = vmatprep.subr.mxu0 0.0
  %755 = vmatpush1.msra.mxu0 0.0
  %756 = vmatprep.subr.mxu0 0.0
  %757 = vmatpush1.msra.mxu0 0.0
  %758 = vmatprep.subr.mxu0 0.0
  %759 = vmatpush1.msra.mxu0 0.0
  %760 = vmatprep.subr.mxu0 0.0
  %761 = vmatpush1.msra.mxu0 0.0
  %762 = vmatprep.subr.mxu0 0.0
  %763 = vmatpush1.msra.mxu0 0.0
  %764 = vmatprep.subr.mxu0 0.0
  %765 = vmatpush1.msra.mxu0 0.0
  %766 = vmatprep.subr.mxu0 0.0
  %767 = vmatpush1.msra.mxu0 0.0
  %768 = vmatprep.subr.mxu0 0.0
  %769 = vmatpush1.msra.mxu0 0.0
  %770 = vmatprep.subr.mxu0 0.0
  %771 = vmatpush1.msra.mxu0 0.0
  %772 = vmatprep.subr.mxu0 0.0
  %773 = vmatpush1.msra.mxu0 0.0
  %774 = vmatprep.subr.mxu0 0.0
  %775 = vmatpush1.msra.mxu0 0.0
  %776 = vmatprep.subr.mxu0 0.0
  %777 = vmatpush1.msra.mxu0 0.0
  %778 = vmatprep.subr.mxu0 0.0
  %779 = vmatpush1.msra.mxu0 0.0
  %780 = vmatprep.subr.mxu0 0.0
  %781 = vmatpush1.msra.mxu0 0.0
  %782 = vmatprep.subr.mxu0 0.0
  %783 = vmatpush1.msra.mxu0 0.0
  %784 = vmatprep.subr.mxu0 0.0
  %785 = vmatpush1.msra.mxu0 %v749
  %786 = vmatprep.subr.mxu0 0.0
  %787 = vmatpush2.msra.mxu0 0.0
  %788 = vmatprep.subr.mxu0 0.0
  %789 = vmatpush2.msra.mxu0 0.0
  %790 = vmatprep.subr.mxu0 0.0
  %791 = vmatpush2.msra.mxu0 0.0
  %792 = vmatprep.subr.mxu0 0.0
  %793 = vmatpush2.msra.mxu0 0.0
  %794 = vmatprep.subr.mxu0 0.0
  %795 = vmatpush2.msra.mxu0 0.0
  %796 = vmatprep.subr.mxu0 0.0
  %797 = vmatpush2.msra.mxu0 0.0
  %798 = vmatprep.subr.mxu0 0.0
  %799 = vmatpush2.msra.mxu0 0.0
  %800 = vmatprep.subr.mxu0 0.0
  %801 = vmatpush2.msra.mxu0 0.0
  %802 = vmatprep.subr.mxu0 0.0
  %803 = vmatpush2.msra.mxu0 0.0
  %804 = vmatprep.subr.mxu0 0.0
  %805 = vmatpush2.msra.mxu0 0.0
  %806 = vmatprep.subr.mxu0 0.0
  %807 = vmatpush2.msra.mxu0 0.0
  %808 = vmatprep.subr.mxu0 0.0
  %809 = vmatpush2.msra.mxu0 0.0
  %810 = vmatprep.subr.mxu0 0.0
  %811 = vmatpush2.msra.mxu0 0.0
  %812 = vmatprep.subr.mxu0 0.0
  %813 = vmatpush2.msra.mxu0 0.0
  %814 = vmatprep.subr.mxu0 0.0
  %815 = vmatpush2.msra.mxu0 0.0
  %816 = vmatprep.subr.mxu0 0.0
  %817 = vmatpush2.msra.mxu0 0.0
  %818 = vmatprep.mubr.f32.mxu0 0.0
  %819 = vmatmul.mubr.f32.gmra.mxu0 %v752
  %v820 = vpop.f32.mrf.mxu0
  %v821 = vadd.f32 0.0, %v820
  %v822 = vpop.f32.mrf.mxu0
  %823 = vdwg.mxu0
  %825 = vrot.lane.b32.xlu0 %v821, 16
  %v826 = vpop.permute.xlu0 %825
  %v828 = vsel %vm146, %v654, %v826
  %v829 = vld [vmem:[%s4] sm:$0xff]
  %v830 = vld [vmem:[%s4 + $0x8] sm:$0xff]
  %v831 = vld [vmem:[%s4 + $0x10] sm:$0xff]
  %v832 = vld [vmem:[%s4 + $0x18] sm:$0xff]
  %v833 = vld [vmem:[%s5] sm:$0x1]
  %v835 = vlaneseq
  %v836 = vshrl.u32 %v835, 7
  %v837 = vsub.s32 0, %v836
  %v838 = vrot.slane %v833, %v837
  %v841 = vsel %vm61, %v486, 0
  %v844 = vsel %vm61, %v828, 0
  %846 = vmatprep.subr.mxu0 0.0
  %847 = vmatpush1.msra.mxu0 0.0
  %848 = vmatprep.subr.mxu0 0.0
  %849 = vmatpush1.msra.mxu0 0.0
  %850 = vmatprep.subr.mxu0 0.0
  %851 = vmatpush1.msra.mxu0 0.0
  %852 = vmatprep.subr.mxu0 0.0
  %853 = vmatpush1.msra.mxu0 0.0
  %854 = vmatprep.subr.mxu0 0.0
  %855 = vmatpush1.msra.mxu0 0.0
  %856 = vmatprep.subr.mxu0 0.0
  %857 = vmatpush1.msra.mxu0 0.0
  %858 = vmatprep.subr.mxu0 0.0
  %859 = vmatpush1.msra.mxu0 0.0
  %860 = vmatprep.subr.mxu0 0.0
  %861 = vmatpush1.msra.mxu0 0.0
  %862 = vmatprep.subr.mxu0 0.0
  %863 = vmatpush1.msra.mxu0 0.0
  %864 = vmatprep.subr.mxu0 0.0
  %865 = vmatpush1.msra.mxu0 0.0
  %866 = vmatprep.subr.mxu0 0.0
  %867 = vmatpush1.msra.mxu0 0.0
  %868 = vmatprep.subr.mxu0 0.0
  %869 = vmatpush1.msra.mxu0 0.0
  %870 = vmatprep.subr.mxu0 0.0
  %871 = vmatpush1.msra.mxu0 %v832
  %872 = vmatprep.subr.mxu0 0.0
  %873 = vmatpush1.msra.mxu0 %v831
  %874 = vmatprep.subr.mxu0 0.0
  %875 = vmatpush1.msra.mxu0 %v830
  %876 = vmatprep.subr.mxu0 0.0
  %877 = vmatpush1.msra.mxu0 %v829
  %878 = vmatprep.subr.mxu0 0.0
  %879 = vmatpush2.msra.mxu0 0.0
  %880 = vmatprep.subr.mxu0 0.0
  %881 = vmatpush2.msra.mxu0 0.0
  %882 = vmatprep.subr.mxu0 0.0
  %883 = vmatpush2.msra.mxu0 0.0
  %884 = vmatprep.subr.mxu0 0.0
  %885 = vmatpush2.msra.mxu0 0.0
  %886 = vmatprep.subr.mxu0 0.0
  %887 = vmatpush2.msra.mxu0 0.0
  %888 = vmatprep.subr.mxu0 0.0
  %889 = vmatpush2.msra.mxu0 0.0
  %890 = vmatprep.subr.mxu0 0.0
  %891 = vmatpush2.msra.mxu0 0.0
  %892 = vmatprep.subr.mxu0 0.0
  %893 = vmatpush2.msra.mxu0 0.0
  %894 = vmatprep.subr.mxu0 0.0
  %895 = vmatpush2.msra.mxu0 0.0
  %896 = vmatprep.subr.mxu0 0.0
  %897 = vmatpush2.msra.mxu0 0.0
  %898 = vmatprep.subr.mxu0 0.0
  %899 = vmatpush2.msra.mxu0 0.0
  %900 = vmatprep.subr.mxu0 0.0
  %901 = vmatpush2.msra.mxu0 0.0
  %902 = vmatprep.subr.mxu0 0.0
  %903 = vmatpush2.msra.mxu0 0.0
  %904 = vmatprep.subr.mxu0 0.0
  %905 = vmatpush2.msra.mxu0 0.0
  %906 = vmatprep.subr.mxu0 0.0
  %907 = vmatpush2.msra.mxu0 0.0
  %908 = vmatprep.subr.mxu0 0.0
  %909 = vmatpush2.msra.mxu0 0.0
  %910 = vmatprep.mubr.f32.mxu0 0.0
  %911 = vmatmul.mubr.f32.gmra.mxu0 %v841
  %v912 = vpop.f32.mrf.mxu0
  %v913 = vadd.f32 %v838, %v912
  %v914 = vpop.f32.mrf.mxu0
  %915 = vmatprep.mubr.f32.mxu0 0.0
  %916 = vmatmul.mubr.f32.gmra.mxu0 %v844
  %v917 = vpop.f32.mrf.mxu0
  %v918 = vadd.f32 %v838, %v917
  %v919 = vpop.f32.mrf.mxu0
  %920 = vdwg.mxu0
  %v921 = vadd.f32 %v913, %v47
  %v922 = vadd.f32 %v918, %v48
  %v923 = vld [vmem:[%s6] sm:$0x1]
  %v924 = vld [vmem:[%s7] sm:$0x1]
  %v925 = vsel %vm61, %v921, 0.0
  %926 = vadd.xlane.f32.xlu0 %v925
  %v927 = vpop.xlane.xlu0 %926
  %v928 = vsel %vm61, %v922, 0.0
  %929 = vadd.xlane.f32.xlu0 %v928
  %v930 = vpop.xlane.xlu0 %929
  %v931 = vrcp.pop 32.0
  %v932 = vmul.f32 %v927, %v931
  %v933 = vmul.f32 %v930, %v931
  %v934 = vsub.f32 %v921, %v932
  %v935 = vsub.f32 %v922, %v933
  %v936 = vmul.f32 %v934, %v934
  %v937 = vmul.f32 %v935, %v935
  %v938 = vsel %vm61, %v936, 0.0
  %939 = vadd.xlane.f32.xlu0 %v938
  %v940 = vpop.xlane.xlu0 %939
  %v941 = vsel %vm61, %v937, 0.0
  %942 = vadd.xlane.f32.xlu0 %v941
  %v943 = vpop.xlane.xlu0 %942
  %v944 = vmul.f32 %v940, %v931
  %v945 = vmul.f32 %v943, %v931
  %v946 = vadd.f32 %v944, 1e-12
  %v947 = vadd.f32 %v945, 1e-12
  %v948 = vrsqrt.pop %v946
  %v949 = vrsqrt.pop %v947
  %v950 = vmul.f32 %v934, %v948
  %v951 = vmul.f32 %v935, %v949
  %v953 = vlaneseq
  %v954 = vshrl.u32 %v953, 7
  %v955 = vsub.s32 0, %v954
  %v956 = vrot.slane %v923, %v955
  %v958 = vmul.f32 %v950, %v956
  %v959 = vmul.f32 %v951, %v956
  %v961 = vlaneseq
  %v962 = vshrl.u32 %v961, 7
  %v963 = vsub.s32 0, %v962
  %v964 = vrot.slane %v924, %v963
  %v966 = vadd.f32 %v958, %v964
  %v967 = vadd.f32 %v959, %v964
  %v968 = vld [vmem:[%s8] sm:$0xff]
  %v969 = vld [vmem:[%s8 + $0x8] sm:$0xff]
  %v970 = vld [vmem:[%s8 + $0x10] sm:$0xff]
  %v971 = vld [vmem:[%s8 + $0x18] sm:$0xff]
  %v972 = vld [vmem:[%s9] sm:$0x1]
  %v974 = vlaneseq
  %v975 = vshrl.u32 %v974, 7
  %v976 = vsub.s32 0, %v975
  %v977 = vrot.slane %v972, %v976
  %v980 = vsel %vm61, %v966, 0
  %v983 = vsel %vm61, %v967, 0
  %985 = vmatprep.subr.mxu0 0.0
  %986 = vmatpush1.msra.mxu0 0.0
  %987 = vmatprep.subr.mxu0 0.0
  %988 = vmatpush1.msra.mxu0 0.0
  %989 = vmatprep.subr.mxu0 0.0
  %990 = vmatpush1.msra.mxu0 0.0
  %991 = vmatprep.subr.mxu0 0.0
  %992 = vmatpush1.msra.mxu0 0.0
  %993 = vmatprep.subr.mxu0 0.0
  %994 = vmatpush1.msra.mxu0 0.0
  %995 = vmatprep.subr.mxu0 0.0
  %996 = vmatpush1.msra.mxu0 0.0
  %997 = vmatprep.subr.mxu0 0.0
  %998 = vmatpush1.msra.mxu0 0.0
  %999 = vmatprep.subr.mxu0 0.0
  %1000 = vmatpush1.msra.mxu0 0.0
  %1001 = vmatprep.subr.mxu0 0.0
  %1002 = vmatpush1.msra.mxu0 0.0
  %1003 = vmatprep.subr.mxu0 0.0
  %1004 = vmatpush1.msra.mxu0 0.0
  %1005 = vmatprep.subr.mxu0 0.0
  %1006 = vmatpush1.msra.mxu0 0.0
  %1007 = vmatprep.subr.mxu0 0.0
  %1008 = vmatpush1.msra.mxu0 0.0
  %1009 = vmatprep.subr.mxu0 0.0
  %1010 = vmatpush1.msra.mxu0 %v971
  %1011 = vmatprep.subr.mxu0 0.0
  %1012 = vmatpush1.msra.mxu0 %v970
  %1013 = vmatprep.subr.mxu0 0.0
  %1014 = vmatpush1.msra.mxu0 %v969
  %1015 = vmatprep.subr.mxu0 0.0
  %1016 = vmatpush1.msra.mxu0 %v968
  %1017 = vmatprep.subr.mxu0 0.0
  %1018 = vmatpush2.msra.mxu0 0.0
  %1019 = vmatprep.subr.mxu0 0.0
  %1020 = vmatpush2.msra.mxu0 0.0
  %1021 = vmatprep.subr.mxu0 0.0
  %1022 = vmatpush2.msra.mxu0 0.0
  %1023 = vmatprep.subr.mxu0 0.0
  %1024 = vmatpush2.msra.mxu0 0.0
  %1025 = vmatprep.subr.mxu0 0.0
  %1026 = vmatpush2.msra.mxu0 0.0
  %1027 = vmatprep.subr.mxu0 0.0
  %1028 = vmatpush2.msra.mxu0 0.0
  %1029 = vmatprep.subr.mxu0 0.0
  %1030 = vmatpush2.msra.mxu0 0.0
  %1031 = vmatprep.subr.mxu0 0.0
  %1032 = vmatpush2.msra.mxu0 0.0
  %1033 = vmatprep.subr.mxu0 0.0
  %1034 = vmatpush2.msra.mxu0 0.0
  %1035 = vmatprep.subr.mxu0 0.0
  %1036 = vmatpush2.msra.mxu0 0.0
  %1037 = vmatprep.subr.mxu0 0.0
  %1038 = vmatpush2.msra.mxu0 0.0
  %1039 = vmatprep.subr.mxu0 0.0
  %1040 = vmatpush2.msra.mxu0 0.0
  %1041 = vmatprep.subr.mxu0 0.0
  %1042 = vmatpush2.msra.mxu0 0.0
  %1043 = vmatprep.subr.mxu0 0.0
  %1044 = vmatpush2.msra.mxu0 0.0
  %1045 = vmatprep.subr.mxu0 0.0
  %1046 = vmatpush2.msra.mxu0 0.0
  %1047 = vmatprep.subr.mxu0 0.0
  %1048 = vmatpush2.msra.mxu0 0.0
  %1049 = vmatprep.mubr.f32.mxu0 0.0
  %1050 = vmatmul.mubr.f32.gmra.mxu0 %v980
  %v1051 = vpop.f32.mrf.mxu0
  %v1052 = vadd.f32 %v977, %v1051
  %v1053 = vpop.f32.mrf.mxu0
  %1054 = vmatprep.mubr.f32.mxu0 0.0
  %1055 = vmatmul.mubr.f32.gmra.mxu0 %v983
  %v1056 = vpop.f32.mrf.mxu0
  %v1057 = vadd.f32 %v977, %v1056
  %v1058 = vpop.f32.mrf.mxu0
  %1059 = vdwg.mxu0
  %v1060 = vmul.f32 %v1052, 0.5
  %v1061 = vmul.f32 %v1057, 0.5
  %v1062 = vmul.f32 %v1052, 0.044715
  %v1063 = vmul.f32 %v1057, 0.044715
  %v1064 = vmul.f32 %v1062, %v1052
  %v1065 = vmul.f32 %v1063, %v1057
  %v1066 = vmul.f32 %v1064, %v1052
  %v1067 = vmul.f32 %v1065, %v1057
  %v1068 = vadd.f32 %v1052, %v1066
  %v1069 = vadd.f32 %v1057, %v1067
  %v1070 = vmul.f32 %v1068, 0.7978846
  %v1071 = vmul.f32 %v1069, 0.7978846
  %v1072 = vtanh.pop %v1070
  %v1073 = vtanh.pop %v1071
  %v1074 = vadd.f32 %v1072, 1.0
  %v1075 = vadd.f32 %v1073, 1.0
  %v1076 = vmul.f32 %v1060, %v1074
  %v1077 = vmul.f32 %v1061, %v1075
  %v1078 = vld [vmem:[%s10] sm:$0xff]
  %v1079 = vld [vmem:[%s10 + $0x8] sm:$0xff]
  %v1080 = vld [vmem:[%s10 + $0x10] sm:$0xff]
  %v1081 = vld [vmem:[%s10 + $0x18] sm:$0xff]
  %v1082 = vld [vmem:[%s10 + $0x20] sm:$0xff]
  %v1083 = vld [vmem:[%s10 + $0x28] sm:$0xff]
  %v1084 = vld [vmem:[%s10 + $0x30] sm:$0xff]
  %v1085 = vld [vmem:[%s10 + $0x38] sm:$0xff]
  %v1086 = vld [vmem:[%s11] sm:$0x1]
  %v1088 = vlaneseq
  %v1089 = vshrl.u32 %v1088, 7
  %v1090 = vsub.s32 0, %v1089
  %v1091 = vrot.slane %v1086, %v1090
  %vm1093 = vcmask 523264
  %v1095 = vsel %vm1093, %v1076, 0
  %v1098 = vsel %vm1093, %v1077, 0
  %1100 = vmatprep.subr.mxu0 0.0
  %1101 = vmatpush1.msra.mxu0 0.0
  %1102 = vmatprep.subr.mxu0 0.0
  %1103 = vmatpush1.msra.mxu0 0.0
  %1104 = vmatprep.subr.mxu0 0.0
  %1105 = vmatpush1.msra.mxu0 0.0
  %1106 = vmatprep.subr.mxu0 0.0
  %1107 = vmatpush1.msra.mxu0 0.0
  %1108 = vmatprep.subr.mxu0 0.0
  %1109 = vmatpush1.msra.mxu0 0.0
  %1110 = vmatprep.subr.mxu0 0.0
  %1111 = vmatpush1.msra.mxu0 0.0
  %1112 = vmatprep.subr.mxu0 0.0
  %1113 = vmatpush1.msra.mxu0 0.0
  %1114 = vmatprep.subr.mxu0 0.0
  %1115 = vmatpush1.msra.mxu0 0.0
  %1116 = vmatprep.subr.mxu0 0.0
  %1117 = vmatpush1.msra.mxu0 %v1085
  %1118 = vmatprep.subr.mxu0 0.0
  %1119 = vmatpush1.msra.mxu0 %v1084
  %1120 = vmatprep.subr.mxu0 0.0
  %1121 = vmatpush1.msra.mxu0 %v1083
  %1122 = vmatprep.subr.mxu0 0.0
  %1123 = vmatpush1.msra.mxu0 %v1082
  %1124 = vmatprep.subr.mxu0 0.0
  %1125 = vmatpush1.msra.mxu0 %v1081
  %1126 = vmatprep.subr.mxu0 0.0
  %1127 = vmatpush1.msra.mxu0 %v1080
  %1128 = vmatprep.subr.mxu0 0.0
  %1129 = vmatpush1.msra.mxu0 %v1079
  %1130 = vmatprep.subr.mxu0 0.0
  %1131 = vmatpush1.msra.mxu0 %v1078
  %1132 = vmatprep.subr.mxu0 0.0
  %1133 = vmatpush2.msra.mxu0 0.0
  %1134 = vmatprep.subr.mxu0 0.0
  %1135 = vmatpush2.msra.mxu0 0.0
  %1136 = vmatprep.subr.mxu0 0.0
  %1137 = vmatpush2.msra.mxu0 0.0
  %1138 = vmatprep.subr.mxu0 0.0
  %1139 = vmatpush2.msra.mxu0 0.0
  %1140 = vmatprep.subr.mxu0 0.0
  %1141 = vmatpush2.msra.mxu0 0.0
  %1142 = vmatprep.subr.mxu0 0.0
  %1143 = vmatpush2.msra.mxu0 0.0
  %1144 = vmatprep.subr.mxu0 0.0
  %1145 = vmatpush2.msra.mxu0 0.0
  %1146 = vmatprep.subr.mxu0 0.0
  %1147 = vmatpush2.msra.mxu0 0.0
  %1148 = vmatprep.subr.mxu0 0.0
  %1149 = vmatpush2.msra.mxu0 0.0
  %1150 = vmatprep.subr.mxu0 0.0
  %1151 = vmatpush2.msra.mxu0 0.0
  %1152 = vmatprep.subr.mxu0 0.0
  %1153 = vmatpush2.msra.mxu0 0.0
  %1154 = vmatprep.subr.mxu0 0.0
  %1155 = vmatpush2.msra.mxu0 0.0
  %1156 = vmatprep.subr.mxu0 0.0
  %1157 = vmatpush2.msra.mxu0 0.0
  %1158 = vmatprep.subr.mxu0 0.0
  %1159 = vmatpush2.msra.mxu0 0.0
  %1160 = vmatprep.subr.mxu0 0.0
  %1161 = vmatpush2.msra.mxu0 0.0
  %1162 = vmatprep.subr.mxu0 0.0
  %1163 = vmatpush2.msra.mxu0 0.0
  %1164 = vmatprep.mubr.f32.mxu0 0.0
  %1165 = vmatmul.mubr.f32.gmra.mxu0 %v1095
  %v1166 = vpop.f32.mrf.mxu0
  %v1167 = vadd.f32 %v1091, %v1166
  %v1168 = vpop.f32.mrf.mxu0
  %1169 = vmatprep.mubr.f32.mxu0 0.0
  %1170 = vmatmul.mubr.f32.gmra.mxu0 %v1098
  %v1171 = vpop.f32.mrf.mxu0
  %v1172 = vadd.f32 %v1091, %v1171
  %v1173 = vpop.f32.mrf.mxu0
  %1174 = vdwg.mxu0
  %v1175 = vadd.f32 %v1167, %v966
  %v1176 = vadd.f32 %v1172, %v967
  %v1177 = vld [vmem:[%s12] sm:$0x1]
  %v1178 = vld [vmem:[%s13] sm:$0x1]
  %v1179 = vsel %vm61, %v1175, 0.0
  %1180 = vadd.xlane.f32.xlu0 %v1179
  %v1181 = vpop.xlane.xlu0 %1180
  %v1182 = vsel %vm61, %v1176, 0.0
  %1183 = vadd.xlane.f32.xlu0 %v1182
  %v1184 = vpop.xlane.xlu0 %1183
  %v1185 = vmul.f32 %v1181, %v931
  %v1186 = vmul.f32 %v1184, %v931
  %v1187 = vsub.f32 %v1175, %v1185
  %v1188 = vsub.f32 %v1176, %v1186
  %v1189 = vmul.f32 %v1187, %v1187
  %v1190 = vmul.f32 %v1188, %v1188
  %v1191 = vsel %vm61, %v1189, 0.0
  %1192 = vadd.xlane.f32.xlu0 %v1191
  %v1193 = vpop.xlane.xlu0 %1192
  %v1194 = vsel %vm61, %v1190, 0.0
  %1195 = vadd.xlane.f32.xlu0 %v1194
  %v1196 = vpop.xlane.xlu0 %1195
  %v1197 = vmul.f32 %v1193, %v931
  %v1198 = vmul.f32 %v1196, %v931
  %v1199 = vadd.f32 %v1197, 1e-12
  %v1200 = vadd.f32 %v1198, 1e-12
  %v1201 = vrsqrt.pop %v1199
  %v1202 = vrsqrt.pop %v1200
  %v1203 = vmul.f32 %v1187, %v1201
  %v1204 = vmul.f32 %v1188, %v1202
  %v1206 = vlaneseq
  %v1207 = vshrl.u32 %v1206, 7
  %v1208 = vsub.s32 0, %v1207
  %v1209 = vrot.slane %v1177, %v1208
  %v1211 = vmul.f32 %v1203, %v1209
  %v1212 = vmul.f32 %v1204, %v1209
  %v1214 = vlaneseq
  %v1215 = vshrl.u32 %v1214, 7
  %v1216 = vsub.s32 0, %v1215
  %v1217 = vrot.slane %v1178, %v1216
  %v1219 = vadd.f32 %v1211, %v1217
  %v1220 = vadd.f32 %v1212, %v1217
  %1221 = vst.msk [vmem:[%s14] sm:$0xff] %vm61, %v1219
  %1222 = vst.msk [vmem:[%s14 + $0x8] sm:$0xff] %vm61, %v1220
  // Predicated region
  $region58: #{bert_mlm_loss.5} parent=0 // pred_check
    _
  $region59: #{bert_mlm_loss.5} parent=0 // pred_check_branch
    %1224 = sbr.rel (0) target = $region61
  $region60: #{bert_mlm_loss.5} parent=0 // pred_region
    _
  $region61: #{bert_mlm_loss.5} parent=0 // pred_fallthru
    _
  // Predicated region
  $region62: #{bert_mlm_loss.5} parent=0 // pred_check
    _
  $region63: #{bert_mlm_loss.5} parent=0 // pred_check_branch
    %1226 = sbr.rel (0) target = $region65
  $region64: #{bert_mlm_loss.5} parent=0 // pred_region
    _
  $region65: #{bert_mlm_loss.5} parent=0 // pred_fallthru
    _

</llo_original>
